<compile_context>
chip_gen: v5e
topology: v5e:2x2
jax: 0.10.0
libtpu: 0.0.40
codegen_flags: <defaults>
</compile_context>

<pallas_src>
import functools

import jax
import jax.numpy as jnp
from jax.experimental import pallas as pl
from jax.experimental.pallas import tpu as pltpu

LANE = 128


def _round_up(n, m):
    return ((n + m - 1) // m) * m


def _pad_nodes(n):
    n_pad = _round_up(max(n, 1), LANE)
    if n_pad > 1024:
        # Coarser granularity only for large N, so divisor-based tiles can be big.
        n_pad = _round_up(n_pad, 512)
    return n_pad


def _divisors(n, step, cap):
    """Divisors of n that are multiples of `step` and <= cap, descending."""
    cap = min(cap, n)
    start = cap - (cap % step)
    return [v for v in range(start, 0, -step) if n % v == 0]


def _vmem_estimate(tm, tk, fin_pad, fout_pad):
    adj = tm * tk * 1 * 2                    # int8 adj tile, double-buffered
    xnb = tk * fin_pad * 2 * 2               # bf16 neighbor feats, double-buffered
    xslf = tm * fin_pad * 2 * 2              # bf16 self feats
    wgt = 2 * fin_pad * fout_pad * 2 * 2     # Wl + Wr (bf16)
    bias = fout_pad * 4 * 2
    degb = tm * LANE * 4 * 2                 # (tm,1) f32 pads to full lane width
    outs = tm * fout_pad * (4 + 2) * 2       # f32 out + bf16 act outputs
    acc = tm * fin_pad * 4                   # f32 accumulator scratch
    return adj + xnb + xslf + wgt + bias + degb + outs + acc


def _choose_tiles(n_pad, fin_pad, fout_pad):
    # v7x-safe defaults (64 MiB physical VMEM). Widened on 128 MiB parts (v5e/v6e).
    tm_cap, tk_cap, vmem_limit = 1024, 2048, 48 << 20
    try:
        if pltpu.get_tpu_info().vmem_capacity_bytes >= (100 << 20):
            tk_cap, vmem_limit = 4096, 100 << 20
    except Exception:
        pass  # conservative defaults are valid on every generation
    budget = vmem_limit - (8 << 20)

    tm = tk = None
    for tm_c in _divisors(n_pad, 32, tm_cap):        # 32: int8 sublane-native tiling
        for tk_c in _divisors(n_pad, LANE, tk_cap):  # 128: lane-native
            if _vmem_estimate(tm_c, tk_c, fin_pad, fout_pad) <= budget:
                tm, tk = tm_c, tk_c
                break
        if tm is not None:
            break
    if tm is None:  # tiny fallback, always fits
        tm, tk = (32 if n_pad % 32 == 0 else n_pad), LANE

    # v7x has 2 TensorCores: keep >= 2 tiles on the "parallel" row axis when each
    # half-tile is still reasonably sized (>= 256 rows). Neutral on v5e/v6e.
    if tm == n_pad and n_pad >= 512:
        tm = n_pad // 2
    return tm, tk, vmem_limit


def _sage_layer_kernel(adj_ref, xnb_ref, xself_ref, deg_ref, wl_ref, wr_ref, b_ref,
                       *rest, emit_act, apply_log_softmax, n_out_valid):
    if emit_act:
        o_ref, act_ref, acc_ref = rest
    else:
        o_ref, acc_ref = rest
        act_ref = None

    k = pl.program_id(1)

    @pl.when(k == 0)
    def _():
        acc_ref[...] = jnp.zeros_like(acc_ref)

    # Counts-weighted neighbor-feature sum for this K tile. adj streams as int8 and is
    # upcast to bf16 here (VPU work hidden under DMA); accumulation stays in f32.
    acc_ref[...] += jnp.dot(adj_ref[...].astype(jnp.bfloat16), xnb_ref[...],
                            preferred_element_type=jnp.float32)

    @pl.when(k == pl.num_programs(1) - 1)
    def _():
        # Mean aggregation: multiply by EUP reciprocal instead of a VALU divide.
        inv_deg = pl.reciprocal(jnp.maximum(deg_ref[...], 1.0), approx=True)  # (TM,1)
        agg = acc_ref[...] * inv_deg

        # Fused projection as two accumulating MXU dots (no (TM, 2*Fin) concat buffer).
        out = jnp.dot(agg.astype(jnp.bfloat16), wl_ref[...],
                      preferred_element_type=jnp.float32)
        out += jnp.dot(xself_ref[...], wr_ref[...],
                       preferred_element_type=jnp.float32)
        out = out + b_ref[...]

        # F.normalize(out, p=2, dim=-1), eps=1e-12 -> rsqrt on the EUP.
        # Padded W/bias columns are zero, so they do not perturb the sum of squares.
        sumsq = jnp.sum(out * out, axis=-1, keepdims=True)
        out = out * jax.lax.rsqrt(jnp.maximum(sumsq, 1e-24))

        if emit_act:
            # relu(emb) in bf16, consumed directly by layer 2 (no wrapper cast/relu).
            act_ref[...] = jnp.maximum(out, 0.0).astype(jnp.bfloat16)

        if apply_log_softmax:
            # Mask padded lanes so they do not contribute to the softmax sum.
            col = jax.lax.broadcasted_iota(jnp.int32, out.shape, 1)
            masked = jnp.where(col < n_out_valid, out, -1e30)
            m = jnp.max(masked, axis=-1, keepdims=True)
            s = masked - m
            lse = jnp.log(jnp.sum(jnp.exp(s), axis=-1, keepdims=True))
            out = s - lse

        o_ref[...] = out.astype(o_ref.dtype)


def sage_layer(adj_i8, deg, x_nb, x_self, wl, wr, bias, *, tm, tk, vmem_limit,
               emit_act, apply_log_softmax, n_out_valid):
    n_pad, fin_pad = x_nb.shape
    fout_pad = wl.shape[1]
    grid = (n_pad // tm, n_pad // tk)

    kernel = functools.partial(
        _sage_layer_kernel,
        emit_act=emit_act,
        apply_log_softmax=apply_log_softmax,
        n_out_valid=n_out_valid,
    )

    out_shapes = [jax.ShapeDtypeStruct((n_pad, fout_pad), jnp.float32)]
    out_specs = [pl.BlockSpec((tm, fout_pad), lambda i, k: (i, 0))]
    if emit_act:
        out_shapes.append(jax.ShapeDtypeStruct((n_pad, fout_pad), jnp.bfloat16))
        out_specs.append(pl.BlockSpec((tm, fout_pad), lambda i, k: (i, 0)))

    # Advisory cost model so XLA can overlap the surrounding scatter / slice ops.
    flops = 2 * n_pad * n_pad * fin_pad + 2 * n_pad * (2 * fin_pad) * fout_pad
    bytes_accessed = (n_pad * n_pad                                   # int8 adj
                      + (n_pad // tm) * n_pad * fin_pad * 2           # xnb re-stream
                      + n_pad * fin_pad * 2                           # xself
                      + n_pad * fout_pad * (4 + (2 if emit_act else 0))
                      + 2 * fin_pad * fout_pad * 2 + n_pad * 4)
    transcendentals = n_pad * 2 + (n_pad * fout_pad if apply_log_softmax else 0)

    return pl.pallas_call(
        kernel,
        out_shape=tuple(out_shapes) if emit_act else out_shapes[0],
        grid_spec=pltpu.PrefetchScalarGridSpec(
            num_scalar_prefetch=0,
            grid=grid,
            in_specs=[
                pl.BlockSpec((tm, tk), lambda i, k: (i, k)),              # adj (int8)
                pl.BlockSpec((tk, fin_pad), lambda i, k: (k, 0)),         # neighbor feats
                pl.BlockSpec((tm, fin_pad), lambda i, k: (i, 0)),         # self feats
                pl.BlockSpec((tm, 1), lambda i, k: (i, 0)),               # in-degree
                pl.BlockSpec((fin_pad, fout_pad), lambda i, k: (0, 0)),   # Wl
                pl.BlockSpec((fin_pad, fout_pad), lambda i, k: (0, 0)),   # Wr
                pl.BlockSpec((1, fout_pad), lambda i, k: (0, 0)),         # bias
            ],
            out_specs=tuple(out_specs) if emit_act else out_specs[0],
            scratch_shapes=[pltpu.VMEM((tm, fin_pad), jnp.float32)],
        ),
        compiler_params=pltpu.CompilerParams(
            dimension_semantics=("parallel", "arbitrary"),
            vmem_limit_bytes=int(vmem_limit)),
        cost_estimate=pl.CostEstimate(flops=int(flops),
                                      transcendentals=int(transcendentals),
                                      bytes_accessed=int(bytes_accessed)),
    )(adj_i8, x_nb, x_self, deg, wl, wr, bias)


def build_adj(edge_index, n_pad):
    """int8 edge-count matrix (exact up to 127 parallel edges) + f32 in-degree column."""
    src = edge_index[0]
    dst = edge_index[1]
    counts = (jnp.zeros((n_pad, n_pad), jnp.int8)
              .at[dst, src].add(jnp.ones(src.shape, jnp.int8)))
    deg = jnp.zeros((n_pad,), jnp.float32).at[dst].add(1.0).reshape(n_pad, 1)
    return counts, deg


def _pack_layer(wl, wr, b, fin_pad, fout_pad):
    def pad_w(a):
        return jnp.pad(a, ((0, fin_pad - a.shape[0]), (0, fout_pad - a.shape[1])))
    wl_p = pad_w(wl).astype(jnp.bfloat16)
    wr_p = pad_w(wr).astype(jnp.bfloat16)
    b_p = jnp.pad(b, ((0, 0), (0, fout_pad - b.shape[1]))).astype(jnp.float32)
    return wl_p, wr_p, b_p


def graphsage_forward(x, edge_index, params):
    n, fin = x.shape
    hidden = params["w1_l"].shape[1]
    fout = params["w2_l"].shape[1]

    n_pad = _pad_nodes(n)
    fin_pad = _round_up(fin, LANE)
    hid_pad = _round_up(hidden, LANE)
    fout_pad = _round_up(fout, LANE)

    adj_i8, deg = build_adj(edge_index, n_pad)

    x_bf16 = jnp.zeros((n_pad, fin_pad), jnp.bfloat16).at[:n, :fin].set(
        x.astype(jnp.bfloat16))

    wl1, wr1, b1 = _pack_layer(params["w1_l"], params["w1_r"], params["b1_l"],
                               fin_pad, hid_pad)
    wl2, wr2, b2 = _pack_layer(params["w2_l"], params["w2_r"], params["b2_l"],
                               hid_pad, fout_pad)

    tm1, tk1, vm1 = _choose_tiles(n_pad, fin_pad, hid_pad)
    tm2, tk2, vm2 = _choose_tiles(n_pad, hid_pad, fout_pad)

    # Layer 1 -> (embedding f32, relu(embedding) bf16). Dropout is eval-mode identity.
    emb_pad, act_pad = sage_layer(adj_i8, deg, x_bf16, x_bf16, wl1, wr1, b1,
                                  tm=tm1, tk=tk1, vmem_limit=vm1,
                                  emit_act=True, apply_log_softmax=False,
                                  n_out_valid=hidden)

    # Layer 2 consumes the bf16 relu activation directly (no wrapper cast / relu).
    out_pad = sage_layer(adj_i8, deg, act_pad, act_pad, wl2, wr2, b2,
                         tm=tm2, tk=tk2, vmem_limit=vm2,
                         emit_act=False, apply_log_softmax=True,
                         n_out_valid=fout)

    return emb_pad[:n, :hidden], out_pad[:n, :fout]


def init_params(key, input_dim, hidden_dim, output_dim):
    ks = jax.random.split(key, 6)

    def lin(k, fin, fout):
        bound = 1.0 / jnp.sqrt(fin)
        return jax.random.uniform(k, (fin, fout), jnp.float32, -bound, bound)

    return {
        "w1_l": lin(ks[0], input_dim, hidden_dim),
        "w1_r": lin(ks[1], input_dim, hidden_dim),
        "b1_l": lin(ks[4], 1, hidden_dim),
        "w2_l": lin(ks[2], hidden_dim, output_dim),
        "w2_r": lin(ks[3], hidden_dim, output_dim),
        "b2_l": lin(ks[5], 1, output_dim),
    }


def _reference_forward(x, edge_index, params):
    """Pure-JAX f32 reference (same math, no padding/bf16) for a sanity check."""
    n = x.shape[0]
    src, dst = edge_index[0], edge_index[1]
    adj = jnp.zeros((n, n), jnp.float32).at[dst, src].add(1.0)
    deg = jnp.maximum(adj.sum(axis=1, keepdims=True), 1.0)

    def layer(h, wl, bl, wr):
        agg = (adj @ h) / deg
        out = agg @ wl + bl + h @ wr
        norm = jnp.sqrt(jnp.sum(out * out, axis=-1, keepdims=True))
        return out / jnp.maximum(norm, 1e-12)

    emb = layer(x, params["w1_l"], params["b1_l"], params["w1_r"])
    h = jnp.maximum(emb, 0.0)
    out = layer(h, params["w2_l"], params["b2_l"], params["w2_r"])
    return emb, jax.nn.log_softmax(out, axis=-1)


if __name__ == "__main__":
    key = jax.random.PRNGKey(0)
    k_x, k_e, k_p = jax.random.split(key, 3)

    num_nodes = 48
    input_dim = 16
    hidden_dim = 32
    output_dim = 7
    num_edges = 160

    x = jax.random.normal(k_x, (num_nodes, input_dim), jnp.float32)
    edge_index = jax.random.randint(k_e, (2, num_edges), 0, num_nodes, jnp.int32)
    params = init_params(k_p, input_dim, hidden_dim, output_dim)

    embedding, output = jax.jit(graphsage_forward)(x, edge_index, params)
    jax.block_until_ready((embedding, output))

    assert embedding.shape == (num_nodes, hidden_dim)
    assert output.shape == (num_nodes, output_dim)
    assert bool(jnp.all(jnp.isfinite(embedding)))
    assert bool(jnp.all(jnp.isfinite(output)))

    emb_ref, out_ref = _reference_forward(x, edge_index, params)
    assert float(jnp.max(jnp.abs(embedding - emb_ref))) < 0.15  # bf16 matmul tolerance
    assert float(jnp.max(jnp.abs(output - out_ref))) < 0.15

    print("KERNEL_OK")
</pallas_src>

<mosaic_0001>
module attributes {stable_mosaic.version = 11 : i64} {
  func.func @_sage_layer_kernel(%arg0: i32, %arg1: i32, %arg2: memref<128x128xi8, #tpu.memory_space<vmem>>, %arg3: memref<128x128xbf16, #tpu.memory_space<vmem>>, %arg4: memref<128x128xbf16, #tpu.memory_space<vmem>>, %arg5: memref<128x1xf32, #tpu.memory_space<vmem>>, %arg6: memref<128x128xbf16, #tpu.memory_space<vmem>>, %arg7: memref<128x128xbf16, #tpu.memory_space<vmem>>, %arg8: memref<1x128xf32, #tpu.memory_space<vmem>>, %arg9: memref<128x128xf32, #tpu.memory_space<vmem>>, %arg10: memref<128x128xbf16, #tpu.memory_space<vmem>>, %arg11: memref<128x128xf32, #tpu.memory_space<vmem>>) attributes {dimension_semantics = [#tpu.dimension_semantics<parallel>, #tpu.dimension_semantics<arbitrary>], iteration_bounds = array<i64: 1, 1>, scalar_prefetch = 0 : i64, scratch_operands = 1 : i64, tpu.core_type = #tpu.core_type<tc>, window_params = [{transform_indices = @transform_0, window_bounds = array<i64: 128, 128>}, {transform_indices = @transform_1, window_bounds = array<i64: 128, 128>}, {transform_indices = @transform_2, window_bounds = array<i64: 128, 128>}, {transform_indices = @transform_3, window_bounds = array<i64: 128, 1>}, {pipeline_mode = #tpu.pipeline_mode<synchronous>, transform_indices = @transform_4, window_bounds = array<i64: 128, 128>}, {pipeline_mode = #tpu.pipeline_mode<synchronous>, transform_indices = @transform_5, window_bounds = array<i64: 128, 128>}, {pipeline_mode = #tpu.pipeline_mode<synchronous>, transform_indices = @transform_6, window_bounds = array<i64: 1, 128>}, {transform_indices = @transform_7, window_bounds = array<i64: 128, 128>}, {transform_indices = @transform_8, window_bounds = array<i64: 128, 128>}]} {
    %c0_i32 = arith.constant 0 : i32
    %0 = arith.cmpi eq, %arg1, %c0_i32 : i32
    %1 = arith.extui %0 : i1 to i32
    %c0_i32_0 = arith.constant 0 : i32
    %2 = arith.cmpi ne, %1, %c0_i32_0 : i32
    scf.if %2 {
      %cst_10 = arith.constant 0.000000e+00 : f32
      %13 = vector.broadcast %cst_10 : f32 to vector<128x128xf32>
      %c0_11 = arith.constant 0 : index
      %c0_12 = arith.constant 0 : index
      %14 = vector.load %arg11[%c0_11, %c0_12] : memref<128x128xf32, #tpu.memory_space<vmem>>, vector<128x128xf32>
      tpu.vector_store %arg11[%c0_11, %c0_12], %13 {strides = array<i32>} : memref<128x128xf32, #tpu.memory_space<vmem>>, vector<128x128xf32>,
    } else {
    }
    %c0 = arith.constant 0 : index
    %c0_1 = arith.constant 0 : index
    %3 = vector.load %arg11[%c0, %c0_1] : memref<128x128xf32, #tpu.memory_space<vmem>>, vector<128x128xf32>
    %c0_2 = arith.constant 0 : index
    %c0_3 = arith.constant 0 : index
    %4 = vector.load %arg2[%c0_2, %c0_3] : memref<128x128xi8, #tpu.memory_space<vmem>>, vector<128x128xi8>
    %5 = arith.sitofp %4 : vector<128x128xi8> to vector<128x128xbf16>
    %c0_4 = arith.constant 0 : index
    %c0_5 = arith.constant 0 : index
    %6 = vector.load %arg3[%c0_4, %c0_5] : memref<128x128xbf16, #tpu.memory_space<vmem>>, vector<128x128xbf16>
    %cst = arith.constant dense<0.000000e+00> : vector<128x128xf32>
    %7 = tpu.matmul %5, %6, %cst {dimension_numbers = #tpu.dot_dimension_numbers<[1], [0], [0], [1], [0, 0, 1, 1], [], []>} : vector<128x128xbf16>, vector<128x128xbf16>, vector<128x128xf32> -> vector<128x128xf32>
    %8 = arith.addf %3, %7 : vector<128x128xf32>
    %c0_6 = arith.constant 0 : index
    %c0_7 = arith.constant 0 : index
    %9 = vector.load %arg11[%c0_6, %c0_7] : memref<128x128xf32, #tpu.memory_space<vmem>>, vector<128x128xf32>
    tpu.vector_store %arg11[%c0_6, %c0_7], %8 {strides = array<i32>} : memref<128x128xf32, #tpu.memory_space<vmem>>, vector<128x128xf32>,
    %c0_i32_8 = arith.constant 0 : i32
    %10 = arith.cmpi eq, %arg1, %c0_i32_8 : i32
    %11 = arith.extui %10 : i1 to i32
    %c0_i32_9 = arith.constant 0 : i32
    %12 = arith.cmpi ne, %11, %c0_i32_9 : i32
    scf.if %12 {
      %c0_10 = arith.constant 0 : index
      %c0_11 = arith.constant 0 : index
      %13 = vector.load %arg5[%c0_10, %c0_11] : memref<128x1xf32, #tpu.memory_space<vmem>>, vector<128x1xf32>
      %cst_12 = arith.constant 1.000000e+00 : f32
      %14 = vector.broadcast %cst_12 : f32 to vector<128x1xf32>
      %15 = arith.maximumf %13, %14 : vector<128x1xf32>
      %16 = tpu.reciprocal %15 {approx = true} : vector<128x1xf32> -> vector<128x1xf32>
      %c0_13 = arith.constant 0 : index
      %c0_14 = arith.constant 0 : index
      %17 = vector.load %arg11[%c0_13, %c0_14] : memref<128x128xf32, #tpu.memory_space<vmem>>, vector<128x128xf32>
      %18 = vector.broadcast %16 : vector<128x1xf32> to vector<128x128xf32>
      %19 = arith.mulf %17, %18 : vector<128x128xf32>
      %20 = arith.truncf %19 : vector<128x128xf32> to vector<128x128xbf16>
      %c0_15 = arith.constant 0 : index
      %c0_16 = arith.constant 0 : index
      %21 = vector.load %arg6[%c0_15, %c0_16] : memref<128x128xbf16, #tpu.memory_space<vmem>>, vector<128x128xbf16>
      %cst_17 = arith.constant dense<0.000000e+00> : vector<128x128xf32>
      %22 = tpu.matmul %20, %21, %cst_17 {dimension_numbers = #tpu.dot_dimension_numbers<[1], [0], [0], [1], [0, 0, 1, 1], [], []>} : vector<128x128xbf16>, vector<128x128xbf16>, vector<128x128xf32> -> vector<128x128xf32>
      %c0_18 = arith.constant 0 : index
      %c0_19 = arith.constant 0 : index
      %23 = vector.load %arg4[%c0_18, %c0_19] : memref<128x128xbf16, #tpu.memory_space<vmem>>, vector<128x128xbf16>
      %c0_20 = arith.constant 0 : index
      %c0_21 = arith.constant 0 : index
      %24 = vector.load %arg7[%c0_20, %c0_21] : memref<128x128xbf16, #tpu.memory_space<vmem>>, vector<128x128xbf16>
      %cst_22 = arith.constant dense<0.000000e+00> : vector<128x128xf32>
      %25 = tpu.matmul %23, %24, %cst_22 {dimension_numbers = #tpu.dot_dimension_numbers<[1], [0], [0], [1], [0, 0, 1, 1], [], []>} : vector<128x128xbf16>, vector<128x128xbf16>, vector<128x128xf32> -> vector<128x128xf32>
      %26 = arith.addf %22, %25 : vector<128x128xf32>
      %c0_23 = arith.constant 0 : index
      %c0_24 = arith.constant 0 : index
      %27 = vector.load %arg8[%c0_23, %c0_24] : memref<1x128xf32, #tpu.memory_space<vmem>>, vector<1x128xf32>
      %28 = vector.broadcast %27 : vector<1x128xf32> to vector<128x128xf32>
      %29 = arith.addf %26, %28 : vector<128x128xf32>
      %30 = arith.mulf %29, %29 : vector<128x128xf32>
      %cst_25 = arith.constant dense<0.000000e+00> : vector<128xf32>
      %31 = vector.multi_reduction <add>, %30, %cst_25 [1] : vector<128x128xf32> to vector<128xf32>
      %32 = vector.shape_cast %31 : vector<128xf32> to vector<128x1xf32>
      %cst_26 = arith.constant 1.000000e-24 : f32
      %33 = vector.broadcast %cst_26 : f32 to vector<128x1xf32>
      %34 = arith.maximumf %32, %33 : vector<128x1xf32>
      %35 = math.rsqrt %34 : vector<128x1xf32>
      %36 = vector.broadcast %35 : vector<128x1xf32> to vector<128x128xf32>
      %37 = arith.mulf %29, %36 : vector<128x128xf32>
      %cst_27 = arith.constant 0.000000e+00 : f32
      %38 = vector.broadcast %cst_27 : f32 to vector<128x128xf32>
      %39 = arith.maximumf %37, %38 : vector<128x128xf32>
      %40 = arith.truncf %39 : vector<128x128xf32> to vector<128x128xbf16>
      %c0_28 = arith.constant 0 : index
      %c0_29 = arith.constant 0 : index
      %41 = vector.load %arg10[%c0_28, %c0_29] : memref<128x128xbf16, #tpu.memory_space<vmem>>, vector<128x128xbf16>
      tpu.vector_store %arg10[%c0_28, %c0_29], %40 {strides = array<i32>} : memref<128x128xbf16, #tpu.memory_space<vmem>>, vector<128x128xbf16>,
      %c0_30 = arith.constant 0 : index
      %c0_31 = arith.constant 0 : index
      %42 = vector.load %arg9[%c0_30, %c0_31] : memref<128x128xf32, #tpu.memory_space<vmem>>, vector<128x128xf32>
      tpu.vector_store %arg9[%c0_30, %c0_31], %37 {strides = array<i32>} : memref<128x128xf32, #tpu.memory_space<vmem>>, vector<128x128xf32>,
    } else {
    }
    return
  }
  func.func @transform_0(%arg0: i32, %arg1: i32) -> (i32, i32) {
    %c0_i32 = arith.constant 0 : i32
    return %arg0, %arg1 : i32, i32
  }
  func.func @transform_1(%arg0: i32, %arg1: i32) -> (i32, i32) {
    %c0_i32 = arith.constant 0 : i32
    %c0_i32_0 = arith.constant 0 : i32
    return %arg1, %c0_i32 : i32, i32
  }
  func.func @transform_2(%arg0: i32, %arg1: i32) -> (i32, i32) {
    %c0_i32 = arith.constant 0 : i32
    %c0_i32_0 = arith.constant 0 : i32
    return %arg0, %c0_i32 : i32, i32
  }
  func.func @transform_3(%arg0: i32, %arg1: i32) -> (i32, i32) {
    %c0_i32 = arith.constant 0 : i32
    %c0_i32_0 = arith.constant 0 : i32
    return %arg0, %c0_i32 : i32, i32
  }
  func.func @transform_4(%arg0: i32, %arg1: i32) -> (i32, i32) {
    %c0_i32 = arith.constant 0 : i32
    %c0_i32_0 = arith.constant 0 : i32
    %c0_i32_1 = arith.constant 0 : i32
    return %c0_i32, %c0_i32_0 : i32, i32
  }
  func.func @transform_5(%arg0: i32, %arg1: i32) -> (i32, i32) {
    %c0_i32 = arith.constant 0 : i32
    %c0_i32_0 = arith.constant 0 : i32
    %c0_i32_1 = arith.constant 0 : i32
    return %c0_i32, %c0_i32_0 : i32, i32
  }
  func.func @transform_6(%arg0: i32, %arg1: i32) -> (i32, i32) {
    %c0_i32 = arith.constant 0 : i32
    %c0_i32_0 = arith.constant 0 : i32
    %c0_i32_1 = arith.constant 0 : i32
    return %c0_i32, %c0_i32_0 : i32, i32
  }
  func.func @transform_7(%arg0: i32, %arg1: i32) -> (i32, i32) {
    %c0_i32 = arith.constant 0 : i32
    %c0_i32_0 = arith.constant 0 : i32
    return %arg0, %c0_i32 : i32, i32
  }
  func.func @transform_8(%arg0: i32, %arg1: i32) -> (i32, i32) {
    %c0_i32 = arith.constant 0 : i32
    %c0_i32_0 = arith.constant 0 : i32
    return %arg0, %c0_i32 : i32, i32
  }
}

module attributes {stable_mosaic.version = 11 : i64} {
  func.func @_sage_layer_kernel(%arg0: i32, %arg1: i32, %arg2: memref<128x128xi8, #tpu.memory_space<vmem>>, %arg3: memref<128x128xbf16, #tpu.memory_space<vmem>>, %arg4: memref<128x128xbf16, #tpu.memory_space<vmem>>, %arg5: memref<128x1xf32, #tpu.memory_space<vmem>>, %arg6: memref<128x128xbf16, #tpu.memory_space<vmem>>, %arg7: memref<128x128xbf16, #tpu.memory_space<vmem>>, %arg8: memref<1x128xf32, #tpu.memory_space<vmem>>, %arg9: memref<128x128xf32, #tpu.memory_space<vmem>>, %arg10: memref<128x128xf32, #tpu.memory_space<vmem>>) attributes {dimension_semantics = [#tpu.dimension_semantics<parallel>, #tpu.dimension_semantics<arbitrary>], iteration_bounds = array<i64: 1, 1>, scalar_prefetch = 0 : i64, scratch_operands = 1 : i64, tpu.core_type = #tpu.core_type<tc>, window_params = [{transform_indices = @transform_0, window_bounds = array<i64: 128, 128>}, {transform_indices = @transform_1, window_bounds = array<i64: 128, 128>}, {transform_indices = @transform_2, window_bounds = array<i64: 128, 128>}, {transform_indices = @transform_3, window_bounds = array<i64: 128, 1>}, {pipeline_mode = #tpu.pipeline_mode<synchronous>, transform_indices = @transform_4, window_bounds = array<i64: 128, 128>}, {pipeline_mode = #tpu.pipeline_mode<synchronous>, transform_indices = @transform_5, window_bounds = array<i64: 128, 128>}, {pipeline_mode = #tpu.pipeline_mode<synchronous>, transform_indices = @transform_6, window_bounds = array<i64: 1, 128>}, {transform_indices = @transform_7, window_bounds = array<i64: 128, 128>}]} {
    %c0_i32 = arith.constant 0 : i32
    %0 = arith.cmpi eq, %arg1, %c0_i32 : i32
    %1 = arith.extui %0 : i1 to i32
    %c0_i32_0 = arith.constant 0 : i32
    %2 = arith.cmpi ne, %1, %c0_i32_0 : i32
    scf.if %2 {
      %cst_10 = arith.constant 0.000000e+00 : f32
      %13 = vector.broadcast %cst_10 : f32 to vector<128x128xf32>
      %c0_11 = arith.constant 0 : index
      %c0_12 = arith.constant 0 : index
      %14 = vector.load %arg10[%c0_11, %c0_12] : memref<128x128xf32, #tpu.memory_space<vmem>>, vector<128x128xf32>
      tpu.vector_store %arg10[%c0_11, %c0_12], %13 {strides = array<i32>} : memref<128x128xf32, #tpu.memory_space<vmem>>, vector<128x128xf32>,
    } else {
    }
    %c0 = arith.constant 0 : index
    %c0_1 = arith.constant 0 : index
    %3 = vector.load %arg10[%c0, %c0_1] : memref<128x128xf32, #tpu.memory_space<vmem>>, vector<128x128xf32>
    %c0_2 = arith.constant 0 : index
    %c0_3 = arith.constant 0 : index
    %4 = vector.load %arg2[%c0_2, %c0_3] : memref<128x128xi8, #tpu.memory_space<vmem>>, vector<128x128xi8>
    %5 = arith.sitofp %4 : vector<128x128xi8> to vector<128x128xbf16>
    %c0_4 = arith.constant 0 : index
    %c0_5 = arith.constant 0 : index
    %6 = vector.load %arg3[%c0_4, %c0_5] : memref<128x128xbf16, #tpu.memory_space<vmem>>, vector<128x128xbf16>
    %cst = arith.constant dense<0.000000e+00> : vector<128x128xf32>
    %7 = tpu.matmul %5, %6, %cst {dimension_numbers = #tpu.dot_dimension_numbers<[1], [0], [0], [1], [0, 0, 1, 1], [], []>} : vector<128x128xbf16>, vector<128x128xbf16>, vector<128x128xf32> -> vector<128x128xf32>
    %8 = arith.addf %3, %7 : vector<128x128xf32>
    %c0_6 = arith.constant 0 : index
    %c0_7 = arith.constant 0 : index
    %9 = vector.load %arg10[%c0_6, %c0_7] : memref<128x128xf32, #tpu.memory_space<vmem>>, vector<128x128xf32>
    tpu.vector_store %arg10[%c0_6, %c0_7], %8 {strides = array<i32>} : memref<128x128xf32, #tpu.memory_space<vmem>>, vector<128x128xf32>,
    %c0_i32_8 = arith.constant 0 : i32
    %10 = arith.cmpi eq, %arg1, %c0_i32_8 : i32
    %11 = arith.extui %10 : i1 to i32
    %c0_i32_9 = arith.constant 0 : i32
    %12 = arith.cmpi ne, %11, %c0_i32_9 : i32
    scf.if %12 {
      %c0_10 = arith.constant 0 : index
      %c0_11 = arith.constant 0 : index
      %13 = vector.load %arg5[%c0_10, %c0_11] : memref<128x1xf32, #tpu.memory_space<vmem>>, vector<128x1xf32>
      %cst_12 = arith.constant 1.000000e+00 : f32
      %14 = vector.broadcast %cst_12 : f32 to vector<128x1xf32>
      %15 = arith.maximumf %13, %14 : vector<128x1xf32>
      %16 = tpu.reciprocal %15 {approx = true} : vector<128x1xf32> -> vector<128x1xf32>
      %c0_13 = arith.constant 0 : index
      %c0_14 = arith.constant 0 : index
      %17 = vector.load %arg10[%c0_13, %c0_14] : memref<128x128xf32, #tpu.memory_space<vmem>>, vector<128x128xf32>
      %18 = vector.broadcast %16 : vector<128x1xf32> to vector<128x128xf32>
      %19 = arith.mulf %17, %18 : vector<128x128xf32>
      %20 = arith.truncf %19 : vector<128x128xf32> to vector<128x128xbf16>
      %c0_15 = arith.constant 0 : index
      %c0_16 = arith.constant 0 : index
      %21 = vector.load %arg6[%c0_15, %c0_16] : memref<128x128xbf16, #tpu.memory_space<vmem>>, vector<128x128xbf16>
      %cst_17 = arith.constant dense<0.000000e+00> : vector<128x128xf32>
      %22 = tpu.matmul %20, %21, %cst_17 {dimension_numbers = #tpu.dot_dimension_numbers<[1], [0], [0], [1], [0, 0, 1, 1], [], []>} : vector<128x128xbf16>, vector<128x128xbf16>, vector<128x128xf32> -> vector<128x128xf32>
      %c0_18 = arith.constant 0 : index
      %c0_19 = arith.constant 0 : index
      %23 = vector.load %arg4[%c0_18, %c0_19] : memref<128x128xbf16, #tpu.memory_space<vmem>>, vector<128x128xbf16>
      %c0_20 = arith.constant 0 : index
      %c0_21 = arith.constant 0 : index
      %24 = vector.load %arg7[%c0_20, %c0_21] : memref<128x128xbf16, #tpu.memory_space<vmem>>, vector<128x128xbf16>
      %cst_22 = arith.constant dense<0.000000e+00> : vector<128x128xf32>
      %25 = tpu.matmul %23, %24, %cst_22 {dimension_numbers = #tpu.dot_dimension_numbers<[1], [0], [0], [1], [0, 0, 1, 1], [], []>} : vector<128x128xbf16>, vector<128x128xbf16>, vector<128x128xf32> -> vector<128x128xf32>
      %26 = arith.addf %22, %25 : vector<128x128xf32>
      %c0_23 = arith.constant 0 : index
      %c0_24 = arith.constant 0 : index
      %27 = vector.load %arg8[%c0_23, %c0_24] : memref<1x128xf32, #tpu.memory_space<vmem>>, vector<1x128xf32>
      %28 = vector.broadcast %27 : vector<1x128xf32> to vector<128x128xf32>
      %29 = arith.addf %26, %28 : vector<128x128xf32>
      %30 = arith.mulf %29, %29 : vector<128x128xf32>
      %cst_25 = arith.constant dense<0.000000e+00> : vector<128xf32>
      %31 = vector.multi_reduction <add>, %30, %cst_25 [1] : vector<128x128xf32> to vector<128xf32>
      %32 = vector.shape_cast %31 : vector<128xf32> to vector<128x1xf32>
      %cst_26 = arith.constant 1.000000e-24 : f32
      %33 = vector.broadcast %cst_26 : f32 to vector<128x1xf32>
      %34 = arith.maximumf %32, %33 : vector<128x1xf32>
      %35 = math.rsqrt %34 : vector<128x1xf32>
      %36 = vector.broadcast %35 : vector<128x1xf32> to vector<128x128xf32>
      %37 = arith.mulf %29, %36 : vector<128x128xf32>
      %38 = tpu.iota {dimensions = array<i32: 1>} : vector<128x128xi32>
      %c7_i32 = arith.constant 7 : i32
      %39 = vector.broadcast %c7_i32 : i32 to vector<128x128xi32>
      %40 = arith.cmpi slt, %38, %39 : vector<128x128xi32>
      %cst_27 = arith.constant -1.000000e+30 : f32
      %41 = vector.broadcast %cst_27 : f32 to vector<128x128xf32>
      %42 = arith.select %40, %37, %41 : vector<128x128xi1>, vector<128x128xf32>
      %cst_28 = arith.constant dense<0xFF800000> : vector<128xf32>
      %43 = vector.multi_reduction <maximumf>, %42, %cst_28 [1] : vector<128x128xf32> to vector<128xf32>
      %44 = vector.shape_cast %43 : vector<128xf32> to vector<128x1xf32>
      %45 = vector.broadcast %44 : vector<128x1xf32> to vector<128x128xf32>
      %46 = arith.subf %42, %45 : vector<128x128xf32>
      %47 = math.exp %46 : vector<128x128xf32>
      %cst_29 = arith.constant dense<0.000000e+00> : vector<128xf32>
      %48 = vector.multi_reduction <add>, %47, %cst_29 [1] : vector<128x128xf32> to vector<128xf32>
      %49 = vector.shape_cast %48 : vector<128xf32> to vector<128x1xf32>
      %50 = math.log %49 : vector<128x1xf32>
      %51 = vector.broadcast %50 : vector<128x1xf32> to vector<128x128xf32>
      %52 = arith.subf %46, %51 : vector<128x128xf32>
      %c0_30 = arith.constant 0 : index
      %c0_31 = arith.constant 0 : index
      %53 = vector.load %arg9[%c0_30, %c0_31] : memref<128x128xf32, #tpu.memory_space<vmem>>, vector<128x128xf32>
      tpu.vector_store %arg9[%c0_30, %c0_31], %52 {strides = array<i32>} : memref<128x128xf32, #tpu.memory_space<vmem>>, vector<128x128xf32>,
    } else {
    }
    return
  }
  func.func @transform_0(%arg0: i32, %arg1: i32) -> (i32, i32) {
    %c0_i32 = arith.constant 0 : i32
    return %arg0, %arg1 : i32, i32
  }
  func.func @transform_1(%arg0: i32, %arg1: i32) -> (i32, i32) {
    %c0_i32 = arith.constant 0 : i32
    %c0_i32_0 = arith.constant 0 : i32
    return %arg1, %c0_i32 : i32, i32
  }
  func.func @transform_2(%arg0: i32, %arg1: i32) -> (i32, i32) {
    %c0_i32 = arith.constant 0 : i32
    %c0_i32_0 = arith.constant 0 : i32
    return %arg0, %c0_i32 : i32, i32
  }
  func.func @transform_3(%arg0: i32, %arg1: i32) -> (i32, i32) {
    %c0_i32 = arith.constant 0 : i32
    %c0_i32_0 = arith.constant 0 : i32
    return %arg0, %c0_i32 : i32, i32
  }
  func.func @transform_4(%arg0: i32, %arg1: i32) -> (i32, i32) {
    %c0_i32 = arith.constant 0 : i32
    %c0_i32_0 = arith.constant 0 : i32
    %c0_i32_1 = arith.constant 0 : i32
    return %c0_i32, %c0_i32_0 : i32, i32
  }
  func.func @transform_5(%arg0: i32, %arg1: i32) -> (i32, i32) {
    %c0_i32 = arith.constant 0 : i32
    %c0_i32_0 = arith.constant 0 : i32
    %c0_i32_1 = arith.constant 0 : i32
    return %c0_i32, %c0_i32_0 : i32, i32
  }
  func.func @transform_6(%arg0: i32, %arg1: i32) -> (i32, i32) {
    %c0_i32 = arith.constant 0 : i32
    %c0_i32_0 = arith.constant 0 : i32
    %c0_i32_1 = arith.constant 0 : i32
    return %c0_i32, %c0_i32_0 : i32, i32
  }
  func.func @transform_7(%arg0: i32, %arg1: i32) -> (i32, i32) {
    %c0_i32 = arith.constant 0 : i32
    %c0_i32_0 = arith.constant 0 : i32
    return %arg0, %c0_i32 : i32, i32
  }
}

</mosaic_0001>

<llo_original>
// kernel: graphsage_forward.2
$region0: #{graphsage_forward.2}
  #allocation0 [shape = 'u32[]', space=smem, size = 0x4, offset = 0x4, fixed_abs, tag = 'smem constant byte address 0x4 - core index']
  #allocation1 [shape = 'u32[72,128]{1,0:T(1,128)}', space=vmem, size = 0x9000, scoped, tag = 'internal scratch']
  #allocation2 [shape = 'f32[128,128]{1,0:T(8,128)}', space=vmem, size = 0x10000, scoped, tag = 'scratch operand']
  %s0 = inlined_call_operand.vmem [shape: s8[128,128], index: 0, kind: input, shape index: {}]
  %s1 = inlined_call_operand.vmem [shape: bf16[128,128], index: 1, kind: input, shape index: {}, may-alias: {1,2}]
  %s2 = inlined_call_operand.vmem [shape: bf16[128,128], index: 2, kind: input, shape index: {}, may-alias: {1,2}]
  %s3 = inlined_call_operand.vmem [shape: f32[128,1], index: 3, kind: input, shape index: {}]
  %s4 = inlined_call_operand.vmem [shape: bf16[128,128], index: 4, kind: input, shape index: {}]
  %s5 = inlined_call_operand.vmem [shape: bf16[128,128], index: 5, kind: input, shape index: {}]
  %s6 = inlined_call_operand.vmem [shape: f32[1,128], index: 6, kind: input, shape index: {}]
  %s7 = inlined_call_operand.vmem [shape: f32[128,128], index: 7, kind: output, shape index: {0}]
  %s8 = inlined_call_operand.vmem [shape: bf16[128,128], index: 8, kind: output, shape index: {1}]
  %9 = xla_tuple %s7, %s8
  %s10 = sld [smem:[#allocation0]]
  $region54: #{graphsage_forward.2} parent=0
    _
  %s12 = ssub.s32 1, %s10
  %s13 = scalar_select 0, %s12, %s10
  // Predicated region
  $region2: #{graphsage_forward.2} parent=0 // pred_check
    _
  $region3: #{graphsage_forward.2} parent=0 // pred_check_branch
    %15 = sbr.rel (0) target = $region5
  $region4: #{graphsage_forward.2} parent=0 // pred_region
    _
  $region5: #{graphsage_forward.2} parent=0 // pred_fallthru
    _
  // Predicated region
  $region6: #{graphsage_forward.2} parent=0 // pred_check
    _
  $region7: #{graphsage_forward.2} parent=0 // pred_check_branch
    %17 = sbr.rel (0) target = $region9
  $region8: #{graphsage_forward.2} parent=0 // pred_region
    _
  $region9: #{graphsage_forward.2} parent=0 // pred_fallthru
    _
  // Predicated region
  $region10: #{graphsage_forward.2} parent=0 // pred_check
    _
  $region11: #{graphsage_forward.2} parent=0 // pred_check_branch
    %19 = sbr.rel (0) target = $region13
  $region12: #{graphsage_forward.2} parent=0 // pred_region
    _
  $region13: #{graphsage_forward.2} parent=0 // pred_fallthru
    _
  // Predicated region
  $region14: #{graphsage_forward.2} parent=0 // pred_check
    _
  $region15: #{graphsage_forward.2} parent=0 // pred_check_branch
    %21 = sbr.rel (0) target = $region17
  $region16: #{graphsage_forward.2} parent=0 // pred_region
    _
  $region17: #{graphsage_forward.2} parent=0 // pred_fallthru
    _
  // Predicated region
  $region18: #{graphsage_forward.2} parent=0 // pred_check
    _
  $region19: #{graphsage_forward.2} parent=0 // pred_check_branch
    %23 = sbr.rel (0) target = $region21
  $region20: #{graphsage_forward.2} parent=0 // pred_region
    _
  $region21: #{graphsage_forward.2} parent=0 // pred_fallthru
    _
  // Predicated region
  $region22: #{graphsage_forward.2} parent=0 // pred_check
    _
  $region23: #{graphsage_forward.2} parent=0 // pred_check_branch
    %25 = sbr.rel (0) target = $region25
  $region24: #{graphsage_forward.2} parent=0 // pred_region
    _
  $region25: #{graphsage_forward.2} parent=0 // pred_fallthru
    _
  // Predicated region
  $region26: #{graphsage_forward.2} parent=0 // pred_check
    _
  $region27: #{graphsage_forward.2} parent=0 // pred_check_branch
    %27 = sbr.rel (0) target = $region29
  $region28: #{graphsage_forward.2} parent=0 // pred_region
    _
  $region29: #{graphsage_forward.2} parent=0 // pred_fallthru
    _
  %p28 = scmp.eq.s32.totalorder 0, 0
  // Predicated region
  $region30: #{graphsage_forward.2} parent=0 // pred_check
    %p29 = pneg %p28
  $region31: #{graphsage_forward.2} parent=0 // pred_check_branch
    %31 = sbr.rel (%p29) target = $region33
  $region32: #{graphsage_forward.2} parent=0 // pred_region
    %32 = vst [vmem:[#allocation2] sm:$0xff] 0.0
    %33 = vst [vmem:[#allocation2 + $0x8] sm:$0xff] 0.0
    %34 = vst [vmem:[#allocation2 + $0x10] sm:$0xff] 0.0
    %35 = vst [vmem:[#allocation2 + $0x18] sm:$0xff] 0.0
    %36 = vst [vmem:[#allocation2 + $0x20] sm:$0xff] 0.0
    %37 = vst [vmem:[#allocation2 + $0x28] sm:$0xff] 0.0
    %38 = vst [vmem:[#allocation2 + $0x30] sm:$0xff] 0.0
    %39 = vst [vmem:[#allocation2 + $0x38] sm:$0xff] 0.0
    %40 = vst [vmem:[#allocation2 + $0x40] sm:$0xff] 0.0
    %41 = vst [vmem:[#allocation2 + $0x48] sm:$0xff] 0.0
    %42 = vst [vmem:[#allocation2 + $0x50] sm:$0xff] 0.0
    %43 = vst [vmem:[#allocation2 + $0x58] sm:$0xff] 0.0
    %44 = vst [vmem:[#allocation2 + $0x60] sm:$0xff] 0.0
    %45 = vst [vmem:[#allocation2 + $0x68] sm:$0xff] 0.0
    %46 = vst [vmem:[#allocation2 + $0x70] sm:$0xff] 0.0
    %47 = vst [vmem:[#allocation2 + $0x78] sm:$0xff] 0.0
  $region33: #{graphsage_forward.2} parent=0 // pred_fallthru
    _
  %v48 = vld [vmem:[#allocation2] sm:$0xff]
  %v49 = vld [vmem:[#allocation2 + $0x8] sm:$0xff]
  %v50 = vld [vmem:[#allocation2 + $0x10] sm:$0xff]
  %v51 = vld [vmem:[#allocation2 + $0x18] sm:$0xff]
  %v52 = vld [vmem:[#allocation2 + $0x20] sm:$0xff]
  %v53 = vld [vmem:[#allocation2 + $0x28] sm:$0xff]
  %v54 = vld [vmem:[#allocation2 + $0x30] sm:$0xff]
  %v55 = vld [vmem:[#allocation2 + $0x38] sm:$0xff]
  %v56 = vld [vmem:[#allocation2 + $0x40] sm:$0xff]
  %v57 = vld [vmem:[#allocation2 + $0x48] sm:$0xff]
  %v58 = vld [vmem:[#allocation2 + $0x50] sm:$0xff]
  %v59 = vld [vmem:[#allocation2 + $0x58] sm:$0xff]
  %v60 = vld [vmem:[#allocation2 + $0x60] sm:$0xff]
  %v61 = vld [vmem:[#allocation2 + $0x68] sm:$0xff]
  %v62 = vld [vmem:[#allocation2 + $0x70] sm:$0xff]
  %v63 = vld [vmem:[#allocation2 + $0x78] sm:$0xff]
  %v64 = vld [vmem:[%s0] sm:$0x3]
  %v65 = vld [vmem:[%s0 + $0x2] sm:$0x3]
  %v66 = vld [vmem:[%s0 + $0x4] sm:$0x3]
  %v67 = vld [vmem:[%s0 + $0x6] sm:$0x3]
  %v68 = vld [vmem:[%s0 + $0x8] sm:$0x3]
  %v69 = vld [vmem:[%s0 + $0xa] sm:$0x3]
  %v70 = vld [vmem:[%s0 + $0xc] sm:$0x3]
  %v71 = vld [vmem:[%s0 + $0xe] sm:$0x3]
  %v72 = vld [vmem:[%s0 + $0x10] sm:$0x3]
  %v73 = vld [vmem:[%s0 + $0x12] sm:$0x3]
  %v74 = vld [vmem:[%s0 + $0x14] sm:$0x3]
  %v75 = vld [vmem:[%s0 + $0x16] sm:$0x3]
  %v76 = vld [vmem:[%s0 + $0x18] sm:$0x3]
  %v77 = vld [vmem:[%s0 + $0x1a] sm:$0x3]
  %v78 = vld [vmem:[%s0 + $0x1c] sm:$0x3]
  %v79 = vld [vmem:[%s0 + $0x1e] sm:$0x3]
  %v80 = vunpack.c.0.s8 %v64
  %v81 = vunpack.c.0.s8 %v65
  %v82 = vunpack.c.0.s8 %v66
  %v83 = vunpack.c.0.s8 %v67
  %v84 = vunpack.c.0.s8 %v68
  %v85 = vunpack.c.0.s8 %v69
  %v86 = vunpack.c.0.s8 %v70
  %v87 = vunpack.c.0.s8 %v71
  %v88 = vunpack.c.0.s8 %v72
  %v89 = vunpack.c.0.s8 %v73
  %v90 = vunpack.c.0.s8 %v74
  %v91 = vunpack.c.0.s8 %v75
  %v92 = vunpack.c.0.s8 %v76
  %v93 = vunpack.c.0.s8 %v77
  %v94 = vunpack.c.0.s8 %v78
  %v95 = vunpack.c.0.s8 %v79
  %v96 = vcvt.s32.f32 %v80
  %v97 = vcvt.s32.f32 %v81
  %v98 = vcvt.s32.f32 %v82
  %v99 = vcvt.s32.f32 %v83
  %v100 = vcvt.s32.f32 %v84
  %v101 = vcvt.s32.f32 %v85
  %v102 = vcvt.s32.f32 %v86
  %v103 = vcvt.s32.f32 %v87
  %v104 = vcvt.s32.f32 %v88
  %v105 = vcvt.s32.f32 %v89
  %v106 = vcvt.s32.f32 %v90
  %v107 = vcvt.s32.f32 %v91
  %v108 = vcvt.s32.f32 %v92
  %v109 = vcvt.s32.f32 %v93
  %v110 = vcvt.s32.f32 %v94
  %v111 = vcvt.s32.f32 %v95
  %v112 = vpack.c.bf16 %v97, %v96
  %v113 = vpack.c.bf16 %v99, %v98
  %v114 = vpack.c.bf16 %v101, %v100
  %v115 = vpack.c.bf16 %v103, %v102
  %v116 = vpack.c.bf16 %v105, %v104
  %v117 = vpack.c.bf16 %v107, %v106
  %v118 = vpack.c.bf16 %v109, %v108
  %v119 = vpack.c.bf16 %v111, %v110
  %v120 = vld [vmem:[%s1] sm:$0xf]
  %v121 = vld [vmem:[%s1 + $0x4] sm:$0xf]
  %v122 = vld [vmem:[%s1 + $0x8] sm:$0xf]
  %v123 = vld [vmem:[%s1 + $0xc] sm:$0xf]
  %v124 = vld [vmem:[%s1 + $0x10] sm:$0xf]
  %v125 = vld [vmem:[%s1 + $0x14] sm:$0xf]
  %v126 = vld [vmem:[%s1 + $0x18] sm:$0xf]
  %v127 = vld [vmem:[%s1 + $0x1c] sm:$0xf]
  %v128 = vld [vmem:[%s1 + $0x20] sm:$0xf]
  %v129 = vld [vmem:[%s1 + $0x24] sm:$0xf]
  %v130 = vld [vmem:[%s1 + $0x28] sm:$0xf]
  %v131 = vld [vmem:[%s1 + $0x2c] sm:$0xf]
  %v132 = vld [vmem:[%s1 + $0x30] sm:$0xf]
  %v133 = vld [vmem:[%s1 + $0x34] sm:$0xf]
  %v134 = vld [vmem:[%s1 + $0x38] sm:$0xf]
  %v135 = vld [vmem:[%s1 + $0x3c] sm:$0xf]
  %v152 = vunpack.c.l.b16 %v120
  %v153 = vunpack.c.l.b16 %v121
  %v154 = vunpack.c.l.b16 %v122
  %v155 = vunpack.c.l.b16 %v123
  %v156 = vunpack.c.l.b16 %v124
  %v157 = vunpack.c.l.b16 %v125
  %v158 = vunpack.c.l.b16 %v126
  %v159 = vunpack.c.l.b16 %v127
  %v160 = vunpack.c.l.b16 %v128
  %v161 = vunpack.c.l.b16 %v129
  %v162 = vunpack.c.l.b16 %v130
  %v163 = vunpack.c.l.b16 %v131
  %v164 = vunpack.c.l.b16 %v132
  %v165 = vunpack.c.l.b16 %v133
  %v166 = vunpack.c.l.b16 %v134
  %v167 = vunpack.c.l.b16 %v135
  %v168 = vpack.c.b16 %v153, %v152
  %v169 = vpack.c.b16 %v155, %v154
  %v170 = vpack.c.b16 %v157, %v156
  %v171 = vpack.c.b16 %v159, %v158
  %v172 = vpack.c.b16 %v161, %v160
  %v173 = vpack.c.b16 %v163, %v162
  %v174 = vpack.c.b16 %v165, %v164
  %v175 = vpack.c.b16 %v167, %v166
  %184 = vmatpush.bf16.msra.mxu0 %v175
  %185 = vmatpush.bf16.msra.mxu0 %v174
  %186 = vmatpush.bf16.msra.mxu0 %v173
  %187 = vmatpush.bf16.msra.mxu0 %v172
  %188 = vmatpush.bf16.msra.mxu0 %v171
  %189 = vmatpush.bf16.msra.mxu0 %v170
  %190 = vmatpush.bf16.msra.mxu0 %v169
  %191 = vmatpush.bf16.msra.mxu0 %v168
  %192 = vmatmul.bf16.gmra.mxu0 %v112
  %v193 = vpop.f32.mrf.mxu0
  %v194 = vadd.f32 0.0, %v193
  %v195 = vpop.f32.mrf.mxu0
  %v196 = vadd.f32 0.0, %v195
  %197 = vmatmul.bf16.gmra.mxu0 %v113
  %v198 = vpop.f32.mrf.mxu0
  %v199 = vadd.f32 0.0, %v198
  %v200 = vpop.f32.mrf.mxu0
  %v201 = vadd.f32 0.0, %v200
  %202 = vmatmul.bf16.gmra.mxu0 %v114
  %v203 = vpop.f32.mrf.mxu0
  %v204 = vadd.f32 0.0, %v203
  %v205 = vpop.f32.mrf.mxu0
  %v206 = vadd.f32 0.0, %v205
  %207 = vmatmul.bf16.gmra.mxu0 %v115
  %v208 = vpop.f32.mrf.mxu0
  %v209 = vadd.f32 0.0, %v208
  %v210 = vpop.f32.mrf.mxu0
  %v211 = vadd.f32 0.0, %v210
  %212 = vmatmul.bf16.gmra.mxu0 %v116
  %v213 = vpop.f32.mrf.mxu0
  %v214 = vadd.f32 0.0, %v213
  %v215 = vpop.f32.mrf.mxu0
  %v216 = vadd.f32 0.0, %v215
  %217 = vmatmul.bf16.gmra.mxu0 %v117
  %v218 = vpop.f32.mrf.mxu0
  %v219 = vadd.f32 0.0, %v218
  %v220 = vpop.f32.mrf.mxu0
  %v221 = vadd.f32 0.0, %v220
  %222 = vmatmul.bf16.gmra.mxu0 %v118
  %v223 = vpop.f32.mrf.mxu0
  %v224 = vadd.f32 0.0, %v223
  %v225 = vpop.f32.mrf.mxu0
  %v226 = vadd.f32 0.0, %v225
  %227 = vmatmul.bf16.gmra.mxu0 %v119
  %v228 = vpop.f32.mrf.mxu0
  %v229 = vadd.f32 0.0, %v228
  %v230 = vpop.f32.mrf.mxu0
  %v231 = vadd.f32 0.0, %v230
  %232 = vdwg.mxu0
  %v233 = vadd.f32 %v48, %v194
  %v234 = vadd.f32 %v49, %v196
  %v235 = vadd.f32 %v50, %v199
  %v236 = vadd.f32 %v51, %v201
  %v237 = vadd.f32 %v52, %v204
  %v238 = vadd.f32 %v53, %v206
  %v239 = vadd.f32 %v54, %v209
  %v240 = vadd.f32 %v55, %v211
  %v241 = vadd.f32 %v56, %v214
  %v242 = vadd.f32 %v57, %v216
  %v243 = vadd.f32 %v58, %v219
  %v244 = vadd.f32 %v59, %v221
  %v245 = vadd.f32 %v60, %v224
  %v246 = vadd.f32 %v61, %v226
  %v247 = vadd.f32 %v62, %v229
  %v248 = vadd.f32 %v63, %v231
  %249 = vst [vmem:[#allocation2] sm:$0xff] %v233
  %250 = vst [vmem:[#allocation2 + $0x8] sm:$0xff] %v234
  %251 = vst [vmem:[#allocation2 + $0x10] sm:$0xff] %v235
  %252 = vst [vmem:[#allocation2 + $0x18] sm:$0xff] %v236
  %253 = vst [vmem:[#allocation2 + $0x20] sm:$0xff] %v237
  %254 = vst [vmem:[#allocation2 + $0x28] sm:$0xff] %v238
  %255 = vst [vmem:[#allocation2 + $0x30] sm:$0xff] %v239
  %256 = vst [vmem:[#allocation2 + $0x38] sm:$0xff] %v240
  %257 = vst [vmem:[#allocation2 + $0x40] sm:$0xff] %v241
  %258 = vst [vmem:[#allocation2 + $0x48] sm:$0xff] %v242
  %259 = vst [vmem:[#allocation2 + $0x50] sm:$0xff] %v243
  %260 = vst [vmem:[#allocation2 + $0x58] sm:$0xff] %v244
  %261 = vst [vmem:[#allocation2 + $0x60] sm:$0xff] %v245
  %262 = vst [vmem:[#allocation2 + $0x68] sm:$0xff] %v246
  %263 = vst [vmem:[#allocation2 + $0x70] sm:$0xff] %v247
  %264 = vst [vmem:[#allocation2 + $0x78] sm:$0xff] %v248
  // Predicated region
  $region34: #{graphsage_forward.2} parent=0 // pred_check
    %p265 = pneg %p28
  $region35: #{graphsage_forward.2} parent=0 // pred_check_branch
    %267 = sbr.rel (%p265) target = $region37
  $region36: #{graphsage_forward.2} parent=0 // pred_region
    %v268 = vld [vmem:[%s3] sm:$0xff]
    %v269 = vld [vmem:[%s3 + $0x8] sm:$0xff]
    %v270 = vld [vmem:[%s3 + $0x10] sm:$0xff]
    %v271 = vld [vmem:[%s3 + $0x18] sm:$0xff]
    %v272 = vld [vmem:[%s3 + $0x20] sm:$0xff]
    %v273 = vld [vmem:[%s3 + $0x28] sm:$0xff]
    %v274 = vld [vmem:[%s3 + $0x30] sm:$0xff]
    %v275 = vld [vmem:[%s3 + $0x38] sm:$0xff]
    %v276 = vld [vmem:[%s3 + $0x40] sm:$0xff]
    %v277 = vld [vmem:[%s3 + $0x48] sm:$0xff]
    %v278 = vld [vmem:[%s3 + $0x50] sm:$0xff]
    %v279 = vld [vmem:[%s3 + $0x58] sm:$0xff]
    %v280 = vld [vmem:[%s3 + $0x60] sm:$0xff]
    %v281 = vld [vmem:[%s3 + $0x68] sm:$0xff]
    %v282 = vld [vmem:[%s3 + $0x70] sm:$0xff]
    %v283 = vld [vmem:[%s3 + $0x78] sm:$0xff]
    %v284 = vmax.f32 %v268, 1.0
    %v285 = vmax.f32 %v269, 1.0
    %v286 = vmax.f32 %v270, 1.0
    %v287 = vmax.f32 %v271, 1.0
    %v288 = vmax.f32 %v272, 1.0
    %v289 = vmax.f32 %v273, 1.0
    %v290 = vmax.f32 %v274, 1.0
    %v291 = vmax.f32 %v275, 1.0
    %v292 = vmax.f32 %v276, 1.0
    %v293 = vmax.f32 %v277, 1.0
    %v294 = vmax.f32 %v278, 1.0
    %v295 = vmax.f32 %v279, 1.0
    %v296 = vmax.f32 %v280, 1.0
    %v297 = vmax.f32 %v281, 1.0
    %v298 = vmax.f32 %v282, 1.0
    %v299 = vmax.f32 %v283, 1.0
    %v300 = vrcp.pop %v284
    %v301 = vrcp.pop %v285
    %v302 = vrcp.pop %v286
    %v303 = vrcp.pop %v287
    %v304 = vrcp.pop %v288
    %v305 = vrcp.pop %v289
    %v306 = vrcp.pop %v290
    %v307 = vrcp.pop %v291
    %v308 = vrcp.pop %v292
    %v309 = vrcp.pop %v293
    %v310 = vrcp.pop %v294
    %v311 = vrcp.pop %v295
    %v312 = vrcp.pop %v296
    %v313 = vrcp.pop %v297
    %v314 = vrcp.pop %v298
    %v315 = vrcp.pop %v299
    %v316 = vld [vmem:[#allocation2] sm:$0xff]
    %v317 = vld [vmem:[#allocation2 + $0x8] sm:$0xff]
    %v318 = vld [vmem:[#allocation2 + $0x10] sm:$0xff]
    %v319 = vld [vmem:[#allocation2 + $0x18] sm:$0xff]
    %v320 = vld [vmem:[#allocation2 + $0x20] sm:$0xff]
    %v321 = vld [vmem:[#allocation2 + $0x28] sm:$0xff]
    %v322 = vld [vmem:[#allocation2 + $0x30] sm:$0xff]
    %v323 = vld [vmem:[#allocation2 + $0x38] sm:$0xff]
    %v324 = vld [vmem:[#allocation2 + $0x40] sm:$0xff]
    %v325 = vld [vmem:[#allocation2 + $0x48] sm:$0xff]
    %v326 = vld [vmem:[#allocation2 + $0x50] sm:$0xff]
    %v327 = vld [vmem:[#allocation2 + $0x58] sm:$0xff]
    %v328 = vld [vmem:[#allocation2 + $0x60] sm:$0xff]
    %v329 = vld [vmem:[#allocation2 + $0x68] sm:$0xff]
    %v330 = vld [vmem:[#allocation2 + $0x70] sm:$0xff]
    %v331 = vld [vmem:[#allocation2 + $0x78] sm:$0xff]
    %333 = vset.pattern.permute.xlu0 0
    %334 = vperm.xlu0 %333, %v300
    %v335 = vpop.permute.xlu0 %334
    %338 = vset.pattern.permute.xlu0 0
    %339 = vperm.xlu0 %338, %v301
    %v340 = vpop.permute.xlu0 %339
    %343 = vset.pattern.permute.xlu0 0
    %344 = vperm.xlu0 %343, %v302
    %v345 = vpop.permute.xlu0 %344
    %348 = vset.pattern.permute.xlu0 0
    %349 = vperm.xlu0 %348, %v303
    %v350 = vpop.permute.xlu0 %349
    %353 = vset.pattern.permute.xlu0 0
    %354 = vperm.xlu0 %353, %v304
    %v355 = vpop.permute.xlu0 %354
    %358 = vset.pattern.permute.xlu0 0
    %359 = vperm.xlu0 %358, %v305
    %v360 = vpop.permute.xlu0 %359
    %363 = vset.pattern.permute.xlu0 0
    %364 = vperm.xlu0 %363, %v306
    %v365 = vpop.permute.xlu0 %364
    %368 = vset.pattern.permute.xlu0 0
    %369 = vperm.xlu0 %368, %v307
    %v370 = vpop.permute.xlu0 %369
    %373 = vset.pattern.permute.xlu0 0
    %374 = vperm.xlu0 %373, %v308
    %v375 = vpop.permute.xlu0 %374
    %378 = vset.pattern.permute.xlu0 0
    %379 = vperm.xlu0 %378, %v309
    %v380 = vpop.permute.xlu0 %379
    %383 = vset.pattern.permute.xlu0 0
    %384 = vperm.xlu0 %383, %v310
    %v385 = vpop.permute.xlu0 %384
    %388 = vset.pattern.permute.xlu0 0
    %389 = vperm.xlu0 %388, %v311
    %v390 = vpop.permute.xlu0 %389
    %393 = vset.pattern.permute.xlu0 0
    %394 = vperm.xlu0 %393, %v312
    %v395 = vpop.permute.xlu0 %394
    %398 = vset.pattern.permute.xlu0 0
    %399 = vperm.xlu0 %398, %v313
    %v400 = vpop.permute.xlu0 %399
    %403 = vset.pattern.permute.xlu0 0
    %404 = vperm.xlu0 %403, %v314
    %v405 = vpop.permute.xlu0 %404
    %408 = vset.pattern.permute.xlu0 0
    %409 = vperm.xlu0 %408, %v315
    %v410 = vpop.permute.xlu0 %409
    %v412 = vmul.f32 %v316, %v335
    %v413 = vmul.f32 %v317, %v340
    %v414 = vmul.f32 %v318, %v345
    %v415 = vmul.f32 %v319, %v350
    %v416 = vmul.f32 %v320, %v355
    %v417 = vmul.f32 %v321, %v360
    %v418 = vmul.f32 %v322, %v365
    %v419 = vmul.f32 %v323, %v370
    %v420 = vmul.f32 %v324, %v375
    %v421 = vmul.f32 %v325, %v380
    %v422 = vmul.f32 %v326, %v385
    %v423 = vmul.f32 %v327, %v390
    %v424 = vmul.f32 %v328, %v395
    %v425 = vmul.f32 %v329, %v400
    %v426 = vmul.f32 %v330, %v405
    %v427 = vmul.f32 %v331, %v410
    %v428 = vpack.c.bf16 %v413, %v412
    %v429 = vpack.c.bf16 %v415, %v414
    %v430 = vpack.c.bf16 %v417, %v416
    %v431 = vpack.c.bf16 %v419, %v418
    %v432 = vpack.c.bf16 %v421, %v420
    %v433 = vpack.c.bf16 %v423, %v422
    %v434 = vpack.c.bf16 %v425, %v424
    %v435 = vpack.c.bf16 %v427, %v426
    %v436 = vld [vmem:[%s4] sm:$0xf]
    %v437 = vld [vmem:[%s4 + $0x4] sm:$0xf]
    %v438 = vld [vmem:[%s4 + $0x8] sm:$0xf]
    %v439 = vld [vmem:[%s4 + $0xc] sm:$0xf]
    %v440 = vld [vmem:[%s4 + $0x10] sm:$0xf]
    %v441 = vld [vmem:[%s4 + $0x14] sm:$0xf]
    %v442 = vld [vmem:[%s4 + $0x18] sm:$0xf]
    %v443 = vld [vmem:[%s4 + $0x1c] sm:$0xf]
    %v444 = vld [vmem:[%s4 + $0x20] sm:$0xf]
    %v445 = vld [vmem:[%s4 + $0x24] sm:$0xf]
    %v446 = vld [vmem:[%s4 + $0x28] sm:$0xf]
    %v447 = vld [vmem:[%s4 + $0x2c] sm:$0xf]
    %v448 = vld [vmem:[%s4 + $0x30] sm:$0xf]
    %v449 = vld [vmem:[%s4 + $0x34] sm:$0xf]
    %v450 = vld [vmem:[%s4 + $0x38] sm:$0xf]
    %v451 = vld [vmem:[%s4 + $0x3c] sm:$0xf]
    %v452 = vld [vmem:[%s2] sm:$0xf]
    %v453 = vld [vmem:[%s2 + $0x4] sm:$0xf]
    %v454 = vld [vmem:[%s2 + $0x8] sm:$0xf]
    %v455 = vld [vmem:[%s2 + $0xc] sm:$0xf]
    %v456 = vld [vmem:[%s2 + $0x10] sm:$0xf]
    %v457 = vld [vmem:[%s2 + $0x14] sm:$0xf]
    %v458 = vld [vmem:[%s2 + $0x18] sm:$0xf]
    %v459 = vld [vmem:[%s2 + $0x1c] sm:$0xf]
    %v460 = vld [vmem:[%s2 + $0x20] sm:$0xf]
    %v461 = vld [vmem:[%s2 + $0x24] sm:$0xf]
    %v462 = vld [vmem:[%s2 + $0x28] sm:$0xf]
    %v463 = vld [vmem:[%s2 + $0x2c] sm:$0xf]
    %v464 = vld [vmem:[%s2 + $0x30] sm:$0xf]
    %v465 = vld [vmem:[%s2 + $0x34] sm:$0xf]
    %v466 = vld [vmem:[%s2 + $0x38] sm:$0xf]
    %v467 = vld [vmem:[%s2 + $0x3c] sm:$0xf]
    %v468 = vld [vmem:[%s5] sm:$0xf]
    %v469 = vld [vmem:[%s5 + $0x4] sm:$0xf]
    %v470 = vld [vmem:[%s5 + $0x8] sm:$0xf]
    %v471 = vld [vmem:[%s5 + $0xc] sm:$0xf]
    %v472 = vld [vmem:[%s5 + $0x10] sm:$0xf]
    %v473 = vld [vmem:[%s5 + $0x14] sm:$0xf]
    %v474 = vld [vmem:[%s5 + $0x18] sm:$0xf]
    %v475 = vld [vmem:[%s5 + $0x1c] sm:$0xf]
    %v476 = vld [vmem:[%s5 + $0x20] sm:$0xf]
    %v477 = vld [vmem:[%s5 + $0x24] sm:$0xf]
    %v478 = vld [vmem:[%s5 + $0x28] sm:$0xf]
    %v479 = vld [vmem:[%s5 + $0x2c] sm:$0xf]
    %v480 = vld [vmem:[%s5 + $0x30] sm:$0xf]
    %v481 = vld [vmem:[%s5 + $0x34] sm:$0xf]
    %v482 = vld [vmem:[%s5 + $0x38] sm:$0xf]
    %v483 = vld [vmem:[%s5 + $0x3c] sm:$0xf]
    %v500 = vunpack.c.l.b16 %v452
    %v501 = vunpack.c.l.b16 %v453
    %v502 = vunpack.c.l.b16 %v454
    %v503 = vunpack.c.l.b16 %v455
    %v504 = vunpack.c.l.b16 %v456
    %v505 = vunpack.c.l.b16 %v457
    %v506 = vunpack.c.l.b16 %v458
    %v507 = vunpack.c.l.b16 %v459
    %v508 = vunpack.c.l.b16 %v460
    %v509 = vunpack.c.l.b16 %v461
    %v510 = vunpack.c.l.b16 %v462
    %v511 = vunpack.c.l.b16 %v463
    %v512 = vunpack.c.l.b16 %v464
    %v513 = vunpack.c.l.b16 %v465
    %v514 = vunpack.c.l.b16 %v466
    %v515 = vunpack.c.l.b16 %v467
    %v516 = vpack.c.b16 %v501, %v500
    %v517 = vpack.c.b16 %v503, %v502
    %v518 = vpack.c.b16 %v505, %v504
    %v519 = vpack.c.b16 %v507, %v506
    %v520 = vpack.c.b16 %v509, %v508
    %v521 = vpack.c.b16 %v511, %v510
    %v522 = vpack.c.b16 %v513, %v512
    %v523 = vpack.c.b16 %v515, %v514
    %v548 = vunpack.c.l.b16 %v468
    %v549 = vunpack.c.l.b16 %v469
    %v550 = vunpack.c.l.b16 %v470
    %v551 = vunpack.c.l.b16 %v471
    %v552 = vunpack.c.l.b16 %v472
    %v553 = vunpack.c.l.b16 %v473
    %v554 = vunpack.c.l.b16 %v474
    %v555 = vunpack.c.l.b16 %v475
    %v556 = vunpack.c.l.b16 %v476
    %v557 = vunpack.c.l.b16 %v477
    %v558 = vunpack.c.l.b16 %v478
    %v559 = vunpack.c.l.b16 %v479
    %v560 = vunpack.c.l.b16 %v480
    %v561 = vunpack.c.l.b16 %v481
    %v562 = vunpack.c.l.b16 %v482
    %v563 = vunpack.c.l.b16 %v483
    %v564 = vpack.c.b16 %v549, %v548
    %v565 = vpack.c.b16 %v551, %v550
    %v566 = vpack.c.b16 %v553, %v552
    %v567 = vpack.c.b16 %v555, %v554
    %v568 = vpack.c.b16 %v557, %v556
    %v569 = vpack.c.b16 %v559, %v558
    %v570 = vpack.c.b16 %v561, %v560
    %v571 = vpack.c.b16 %v563, %v562
    %580 = vmatpush.bf16.msra.mxu0 %v571
    %581 = vmatpush.bf16.msra.mxu0 %v570
    %582 = vmatpush.bf16.msra.mxu0 %v569
    %583 = vmatpush.bf16.msra.mxu0 %v568
    %584 = vmatpush.bf16.msra.mxu0 %v567
    %585 = vmatpush.bf16.msra.mxu0 %v566
    %586 = vmatpush.bf16.msra.mxu0 %v565
    %587 = vmatpush.bf16.msra.mxu0 %v564
    %588 = vmatmul.bf16.gmra.mxu0 %v516
    %v589 = vpop.f32.mrf.mxu0
    %v590 = vadd.f32 0.0, %v589
    %v591 = vpop.f32.mrf.mxu0
    %v592 = vadd.f32 0.0, %v591
    %593 = vmatmul.bf16.gmra.mxu0 %v517
    %v594 = vpop.f32.mrf.mxu0
    %v595 = vadd.f32 0.0, %v594
    %v596 = vpop.f32.mrf.mxu0
    %v597 = vadd.f32 0.0, %v596
    %598 = vmatmul.bf16.gmra.mxu0 %v518
    %v599 = vpop.f32.mrf.mxu0
    %v600 = vadd.f32 0.0, %v599
    %v601 = vpop.f32.mrf.mxu0
    %v602 = vadd.f32 0.0, %v601
    %603 = vmatmul.bf16.gmra.mxu0 %v519
    %v604 = vpop.f32.mrf.mxu0
    %v605 = vadd.f32 0.0, %v604
    %v606 = vpop.f32.mrf.mxu0
    %v607 = vadd.f32 0.0, %v606
    %608 = vmatmul.bf16.gmra.mxu0 %v520
    %v609 = vpop.f32.mrf.mxu0
    %v610 = vadd.f32 0.0, %v609
    %v611 = vpop.f32.mrf.mxu0
    %v612 = vadd.f32 0.0, %v611
    %613 = vmatmul.bf16.gmra.mxu0 %v521
    %v614 = vpop.f32.mrf.mxu0
    %v615 = vadd.f32 0.0, %v614
    %v616 = vpop.f32.mrf.mxu0
    %v617 = vadd.f32 0.0, %v616
    %618 = vmatmul.bf16.gmra.mxu0 %v522
    %v619 = vpop.f32.mrf.mxu0
    %v620 = vadd.f32 0.0, %v619
    %v621 = vpop.f32.mrf.mxu0
    %v622 = vadd.f32 0.0, %v621
    %623 = vmatmul.bf16.gmra.mxu0 %v523
    %v624 = vpop.f32.mrf.mxu0
    %v625 = vadd.f32 0.0, %v624
    %v626 = vpop.f32.mrf.mxu0
    %v627 = vadd.f32 0.0, %v626
    %628 = vdwg.mxu0
    %v645 = vunpack.c.l.b16 %v436
    %v646 = vunpack.c.l.b16 %v437
    %v647 = vunpack.c.l.b16 %v438
    %v648 = vunpack.c.l.b16 %v439
    %v649 = vunpack.c.l.b16 %v440
    %v650 = vunpack.c.l.b16 %v441
    %v651 = vunpack.c.l.b16 %v442
    %v652 = vunpack.c.l.b16 %v443
    %v653 = vunpack.c.l.b16 %v444
    %v654 = vunpack.c.l.b16 %v445
    %v655 = vunpack.c.l.b16 %v446
    %v656 = vunpack.c.l.b16 %v447
    %v657 = vunpack.c.l.b16 %v448
    %v658 = vunpack.c.l.b16 %v449
    %v659 = vunpack.c.l.b16 %v450
    %v660 = vunpack.c.l.b16 %v451
    %v661 = vpack.c.b16 %v646, %v645
    %v662 = vpack.c.b16 %v648, %v647
    %v663 = vpack.c.b16 %v650, %v649
    %v664 = vpack.c.b16 %v652, %v651
    %v665 = vpack.c.b16 %v654, %v653
    %v666 = vpack.c.b16 %v656, %v655
    %v667 = vpack.c.b16 %v658, %v657
    %v668 = vpack.c.b16 %v660, %v659
    %677 = vmatpush.bf16.msra.mxu0 %v668
    %678 = vmatpush.bf16.msra.mxu0 %v667
    %679 = vmatpush.bf16.msra.mxu0 %v666
    %680 = vmatpush.bf16.msra.mxu0 %v665
    %681 = vmatpush.bf16.msra.mxu0 %v664
    %682 = vmatpush.bf16.msra.mxu0 %v663
    %683 = vmatpush.bf16.msra.mxu0 %v662
    %684 = vmatpush.bf16.msra.mxu0 %v661
    %685 = vmatmul.bf16.gmra.mxu0 %v428
    %v686 = vpop.f32.mrf.mxu0
    %v687 = vadd.f32 %v590, %v686
    %v688 = vpop.f32.mrf.mxu0
    %v689 = vadd.f32 %v592, %v688
    %690 = vmatmul.bf16.gmra.mxu0 %v429
    %v691 = vpop.f32.mrf.mxu0
    %v692 = vadd.f32 %v595, %v691
    %v693 = vpop.f32.mrf.mxu0
    %v694 = vadd.f32 %v597, %v693
    %695 = vmatmul.bf16.gmra.mxu0 %v430
    %v696 = vpop.f32.mrf.mxu0
    %v697 = vadd.f32 %v600, %v696
    %v698 = vpop.f32.mrf.mxu0
    %v699 = vadd.f32 %v602, %v698
    %700 = vmatmul.bf16.gmra.mxu0 %v431
    %v701 = vpop.f32.mrf.mxu0
    %v702 = vadd.f32 %v605, %v701
    %v703 = vpop.f32.mrf.mxu0
    %v704 = vadd.f32 %v607, %v703
    %705 = vmatmul.bf16.gmra.mxu0 %v432
    %v706 = vpop.f32.mrf.mxu0
    %v707 = vadd.f32 %v610, %v706
    %v708 = vpop.f32.mrf.mxu0
    %v709 = vadd.f32 %v612, %v708
    %710 = vmatmul.bf16.gmra.mxu0 %v433
    %v711 = vpop.f32.mrf.mxu0
    %v712 = vadd.f32 %v615, %v711
    %v713 = vpop.f32.mrf.mxu0
    %v714 = vadd.f32 %v617, %v713
    %715 = vmatmul.bf16.gmra.mxu0 %v434
    %v716 = vpop.f32.mrf.mxu0
    %v717 = vadd.f32 %v620, %v716
    %v718 = vpop.f32.mrf.mxu0
    %v719 = vadd.f32 %v622, %v718
    %720 = vmatmul.bf16.gmra.mxu0 %v435
    %v721 = vpop.f32.mrf.mxu0
    %v722 = vadd.f32 %v625, %v721
    %v723 = vpop.f32.mrf.mxu0
    %v724 = vadd.f32 %v627, %v723
    %725 = vdwg.mxu0
    %v726 = vld [vmem:[%s6] sm:$0x1]
    %v728 = vperm.slane %v726, 0
    %v730 = vadd.f32 %v687, %v728
    %v731 = vadd.f32 %v689, %v728
    %v732 = vadd.f32 %v692, %v728
    %v733 = vadd.f32 %v694, %v728
    %v734 = vadd.f32 %v697, %v728
    %v735 = vadd.f32 %v699, %v728
    %v736 = vadd.f32 %v702, %v728
    %v737 = vadd.f32 %v704, %v728
    %v738 = vadd.f32 %v707, %v728
    %v739 = vadd.f32 %v709, %v728
    %v740 = vadd.f32 %v712, %v728
    %v741 = vadd.f32 %v714, %v728
    %v742 = vadd.f32 %v717, %v728
    %v743 = vadd.f32 %v719, %v728
    %v744 = vadd.f32 %v722, %v728
    %v745 = vadd.f32 %v724, %v728
    %v746 = vmul.f32 %v730, %v730
    %v747 = vmul.f32 %v731, %v731
    %v748 = vmul.f32 %v732, %v732
    %v749 = vmul.f32 %v733, %v733
    %v750 = vmul.f32 %v734, %v734
    %v751 = vmul.f32 %v735, %v735
    %v752 = vmul.f32 %v736, %v736
    %v753 = vmul.f32 %v737, %v737
    %v754 = vmul.f32 %v738, %v738
    %v755 = vmul.f32 %v739, %v739
    %v756 = vmul.f32 %v740, %v740
    %v757 = vmul.f32 %v741, %v741
    %v758 = vmul.f32 %v742, %v742
    %v759 = vmul.f32 %v743, %v743
    %v760 = vmul.f32 %v744, %v744
    %v761 = vmul.f32 %v745, %v745
    %762 = vadd.xlane.f32.xlu0 %v746
    %v763 = vpop.xlane.xlu0 %762
    %764 = vadd.xlane.f32.xlu0 %v747
    %v765 = vpop.xlane.xlu0 %764
    %766 = vadd.xlane.f32.xlu0 %v748
    %v767 = vpop.xlane.xlu0 %766
    %768 = vadd.xlane.f32.xlu0 %v749
    %v769 = vpop.xlane.xlu0 %768
    %770 = vadd.xlane.f32.xlu0 %v750
    %v771 = vpop.xlane.xlu0 %770
    %772 = vadd.xlane.f32.xlu0 %v751
    %v773 = vpop.xlane.xlu0 %772
    %774 = vadd.xlane.f32.xlu0 %v752
    %v775 = vpop.xlane.xlu0 %774
    %776 = vadd.xlane.f32.xlu0 %v753
    %v777 = vpop.xlane.xlu0 %776
    %778 = vadd.xlane.f32.xlu0 %v754
    %v779 = vpop.xlane.xlu0 %778
    %780 = vadd.xlane.f32.xlu0 %v755
    %v781 = vpop.xlane.xlu0 %780
    %782 = vadd.xlane.f32.xlu0 %v756
    %v783 = vpop.xlane.xlu0 %782
    %784 = vadd.xlane.f32.xlu0 %v757
    %v785 = vpop.xlane.xlu0 %784
    %786 = vadd.xlane.f32.xlu0 %v758
    %v787 = vpop.xlane.xlu0 %786
    %788 = vadd.xlane.f32.xlu0 %v759
    %v789 = vpop.xlane.xlu0 %788
    %790 = vadd.xlane.f32.xlu0 %v760
    %v791 = vpop.xlane.xlu0 %790
    %792 = vadd.xlane.f32.xlu0 %v761
    %v793 = vpop.xlane.xlu0 %792
    %v794 = vmax.f32 %v763, 1e-24
    %v795 = vmax.f32 %v765, 1e-24
    %v796 = vmax.f32 %v767, 1e-24
    %v797 = vmax.f32 %v769, 1e-24
    %v798 = vmax.f32 %v771, 1e-24
    %v799 = vmax.f32 %v773, 1e-24
    %v800 = vmax.f32 %v775, 1e-24
    %v801 = vmax.f32 %v777, 1e-24
    %v802 = vmax.f32 %v779, 1e-24
    %v803 = vmax.f32 %v781, 1e-24
    %v804 = vmax.f32 %v783, 1e-24
    %v805 = vmax.f32 %v785, 1e-24
    %v806 = vmax.f32 %v787, 1e-24
    %v807 = vmax.f32 %v789, 1e-24
    %v808 = vmax.f32 %v791, 1e-24
    %v809 = vmax.f32 %v793, 1e-24
    %v810 = vrsqrt.pop %v794
    %v811 = vmul.f32 %v810, %v794
    %v812 = vmul.f32 %v811, %v810
    %v813 = vmul.f32 0.5, %v812
    %v814 = vsub.f32 1.5, %v813
    %v815 = vmul.f32 %v810, %v814
    %vm816 = vweird.f32 %v794
    %vm817 = vweird.f32 %v810
    %vm818 = vmor %vm816, %vm817
    %v819 = vsel %vm818, %v810, %v815
    %v820 = vrsqrt.pop %v795
    %v821 = vmul.f32 %v820, %v795
    %v822 = vmul.f32 %v821, %v820
    %v823 = vmul.f32 0.5, %v822
    %v824 = vsub.f32 1.5, %v823
    %v825 = vmul.f32 %v820, %v824
    %vm826 = vweird.f32 %v795
    %vm827 = vweird.f32 %v820
    %vm828 = vmor %vm826, %vm827
    %v829 = vsel %vm828, %v820, %v825
    %v830 = vrsqrt.pop %v796
    %v831 = vmul.f32 %v830, %v796
    %v832 = vmul.f32 %v831, %v830
    %v833 = vmul.f32 0.5, %v832
    %v834 = vsub.f32 1.5, %v833
    %v835 = vmul.f32 %v830, %v834
    %vm836 = vweird.f32 %v796
    %vm837 = vweird.f32 %v830
    %vm838 = vmor %vm836, %vm837
    %v839 = vsel %vm838, %v830, %v835
    %v840 = vrsqrt.pop %v797
    %v841 = vmul.f32 %v840, %v797
    %v842 = vmul.f32 %v841, %v840
    %v843 = vmul.f32 0.5, %v842
    %v844 = vsub.f32 1.5, %v843
    %v845 = vmul.f32 %v840, %v844
    %vm846 = vweird.f32 %v797
    %vm847 = vweird.f32 %v840
    %vm848 = vmor %vm846, %vm847
    %v849 = vsel %vm848, %v840, %v845
    %v850 = vrsqrt.pop %v798
    %v851 = vmul.f32 %v850, %v798
    %v852 = vmul.f32 %v851, %v850
    %v853 = vmul.f32 0.5, %v852
    %v854 = vsub.f32 1.5, %v853
    %v855 = vmul.f32 %v850, %v854
    %vm856 = vweird.f32 %v798
    %vm857 = vweird.f32 %v850
    %vm858 = vmor %vm856, %vm857
    %v859 = vsel %vm858, %v850, %v855
    %v860 = vrsqrt.pop %v799
    %v861 = vmul.f32 %v860, %v799
    %v862 = vmul.f32 %v861, %v860
    %v863 = vmul.f32 0.5, %v862
    %v864 = vsub.f32 1.5, %v863
    %v865 = vmul.f32 %v860, %v864
    %vm866 = vweird.f32 %v799
    %vm867 = vweird.f32 %v860
    %vm868 = vmor %vm866, %vm867
    %v869 = vsel %vm868, %v860, %v865
    %v870 = vrsqrt.pop %v800
    %v871 = vmul.f32 %v870, %v800
    %v872 = vmul.f32 %v871, %v870
    %v873 = vmul.f32 0.5, %v872
    %v874 = vsub.f32 1.5, %v873
    %v875 = vmul.f32 %v870, %v874
    %vm876 = vweird.f32 %v800
    %vm877 = vweird.f32 %v870
    %vm878 = vmor %vm876, %vm877
    %v879 = vsel %vm878, %v870, %v875
    %v880 = vrsqrt.pop %v801
    %v881 = vmul.f32 %v880, %v801
    %v882 = vmul.f32 %v881, %v880
    %v883 = vmul.f32 0.5, %v882
    %v884 = vsub.f32 1.5, %v883
    %v885 = vmul.f32 %v880, %v884
    %vm886 = vweird.f32 %v801
    %vm887 = vweird.f32 %v880
    %vm888 = vmor %vm886, %vm887
    %v889 = vsel %vm888, %v880, %v885
    %v890 = vrsqrt.pop %v802
    %v891 = vmul.f32 %v890, %v802
    %v892 = vmul.f32 %v891, %v890
    %v893 = vmul.f32 0.5, %v892
    %v894 = vsub.f32 1.5, %v893
    %v895 = vmul.f32 %v890, %v894
    %vm896 = vweird.f32 %v802
    %vm897 = vweird.f32 %v890
    %vm898 = vmor %vm896, %vm897
    %v899 = vsel %vm898, %v890, %v895
    %v900 = vrsqrt.pop %v803
    %v901 = vmul.f32 %v900, %v803
    %v902 = vmul.f32 %v901, %v900
    %v903 = vmul.f32 0.5, %v902
    %v904 = vsub.f32 1.5, %v903
    %v905 = vmul.f32 %v900, %v904
    %vm906 = vweird.f32 %v803
    %vm907 = vweird.f32 %v900
    %vm908 = vmor %vm906, %vm907
    %v909 = vsel %vm908, %v900, %v905
    %v910 = vrsqrt.pop %v804
    %v911 = vmul.f32 %v910, %v804
    %v912 = vmul.f32 %v911, %v910
    %v913 = vmul.f32 0.5, %v912
    %v914 = vsub.f32 1.5, %v913
    %v915 = vmul.f32 %v910, %v914
    %vm916 = vweird.f32 %v804
    %vm917 = vweird.f32 %v910
    %vm918 = vmor %vm916, %vm917
    %v919 = vsel %vm918, %v910, %v915
    %v920 = vrsqrt.pop %v805
    %v921 = vmul.f32 %v920, %v805
    %v922 = vmul.f32 %v921, %v920
    %v923 = vmul.f32 0.5, %v922
    %v924 = vsub.f32 1.5, %v923
    %v925 = vmul.f32 %v920, %v924
    %vm926 = vweird.f32 %v805
    %vm927 = vweird.f32 %v920
    %vm928 = vmor %vm926, %vm927
    %v929 = vsel %vm928, %v920, %v925
    %v930 = vrsqrt.pop %v806
    %v931 = vmul.f32 %v930, %v806
    %v932 = vmul.f32 %v931, %v930
    %v933 = vmul.f32 0.5, %v932
    %v934 = vsub.f32 1.5, %v933
    %v935 = vmul.f32 %v930, %v934
    %vm936 = vweird.f32 %v806
    %vm937 = vweird.f32 %v930
    %vm938 = vmor %vm936, %vm937
    %v939 = vsel %vm938, %v930, %v935
    %v940 = vrsqrt.pop %v807
    %v941 = vmul.f32 %v940, %v807
    %v942 = vmul.f32 %v941, %v940
    %v943 = vmul.f32 0.5, %v942
    %v944 = vsub.f32 1.5, %v943
    %v945 = vmul.f32 %v940, %v944
    %vm946 = vweird.f32 %v807
    %vm947 = vweird.f32 %v940
    %vm948 = vmor %vm946, %vm947
    %v949 = vsel %vm948, %v940, %v945
    %v950 = vrsqrt.pop %v808
    %v951 = vmul.f32 %v950, %v808
    %v952 = vmul.f32 %v951, %v950
    %v953 = vmul.f32 0.5, %v952
    %v954 = vsub.f32 1.5, %v953
    %v955 = vmul.f32 %v950, %v954
    %vm956 = vweird.f32 %v808
    %vm957 = vweird.f32 %v950
    %vm958 = vmor %vm956, %vm957
    %v959 = vsel %vm958, %v950, %v955
    %v960 = vrsqrt.pop %v809
    %v961 = vmul.f32 %v960, %v809
    %v962 = vmul.f32 %v961, %v960
    %v963 = vmul.f32 0.5, %v962
    %v964 = vsub.f32 1.5, %v963
    %v965 = vmul.f32 %v960, %v964
    %vm966 = vweird.f32 %v809
    %vm967 = vweird.f32 %v960
    %vm968 = vmor %vm966, %vm967
    %v969 = vsel %vm968, %v960, %v965
    %v970 = vmul.f32 %v730, %v819
    %v971 = vmul.f32 %v731, %v829
    %v972 = vmul.f32 %v732, %v839
    %v973 = vmul.f32 %v733, %v849
    %v974 = vmul.f32 %v734, %v859
    %v975 = vmul.f32 %v735, %v869
    %v976 = vmul.f32 %v736, %v879
    %v977 = vmul.f32 %v737, %v889
    %v978 = vmul.f32 %v738, %v899
    %v979 = vmul.f32 %v739, %v909
    %v980 = vmul.f32 %v740, %v919
    %v981 = vmul.f32 %v741, %v929
    %v982 = vmul.f32 %v742, %v939
    %v983 = vmul.f32 %v743, %v949
    %v984 = vmul.f32 %v744, %v959
    %v985 = vmul.f32 %v745, %v969
    %v986 = vmax.f32 %v970, 0.0
    %v987 = vmax.f32 %v971, 0.0
    %v988 = vmax.f32 %v972, 0.0
    %v989 = vmax.f32 %v973, 0.0
    %v990 = vmax.f32 %v974, 0.0
    %v991 = vmax.f32 %v975, 0.0
    %v992 = vmax.f32 %v976, 0.0
    %v993 = vmax.f32 %v977, 0.0
    %v994 = vmax.f32 %v978, 0.0
    %v995 = vmax.f32 %v979, 0.0
    %v996 = vmax.f32 %v980, 0.0
    %v997 = vmax.f32 %v981, 0.0
    %v998 = vmax.f32 %v982, 0.0
    %v999 = vmax.f32 %v983, 0.0
    %v1000 = vmax.f32 %v984, 0.0
    %v1001 = vmax.f32 %v985, 0.0
    %v1002 = vpack.c.bf16 %v986, %v986
    %v1003 = vpack.c.bf16 %v987, %v987
    %v1004 = vpack.c.bf16 %v988, %v988
    %v1005 = vpack.c.bf16 %v989, %v989
    %v1006 = vpack.c.bf16 %v990, %v990
    %v1007 = vpack.c.bf16 %v991, %v991
    %v1008 = vpack.c.bf16 %v992, %v992
    %v1009 = vpack.c.bf16 %v993, %v993
    %v1010 = vpack.c.bf16 %v994, %v994
    %v1011 = vpack.c.bf16 %v995, %v995
    %v1012 = vpack.c.bf16 %v996, %v996
    %v1013 = vpack.c.bf16 %v997, %v997
    %v1014 = vpack.c.bf16 %v998, %v998
    %v1015 = vpack.c.bf16 %v999, %v999
    %v1016 = vpack.c.bf16 %v1000, %v1000
    %v1017 = vpack.c.bf16 %v1001, %v1001
    %1018 = vst [vmem:[%s8] sm:$0xf] %v1002
    %1019 = vst [vmem:[%s8 + $0x4] sm:$0xf] %v1003
    %1020 = vst [vmem:[%s8 + $0x8] sm:$0xf] %v1004
    %1021 = vst [vmem:[%s8 + $0xc] sm:$0xf] %v1005
    %1022 = vst [vmem:[%s8 + $0x10] sm:$0xf] %v1006
    %1023 = vst [vmem:[%s8 + $0x14] sm:$0xf] %v1007
    %1024 = vst [vmem:[%s8 + $0x18] sm:$0xf] %v1008
    %1025 = vst [vmem:[%s8 + $0x1c] sm:$0xf] %v1009
    %1026 = vst [vmem:[%s8 + $0x20] sm:$0xf] %v1010
    %1027 = vst [vmem:[%s8 + $0x24] sm:$0xf] %v1011
    %1028 = vst [vmem:[%s8 + $0x28] sm:$0xf] %v1012
    %1029 = vst [vmem:[%s8 + $0x2c] sm:$0xf] %v1013
    %1030 = vst [vmem:[%s8 + $0x30] sm:$0xf] %v1014
    %1031 = vst [vmem:[%s8 + $0x34] sm:$0xf] %v1015
    %1032 = vst [vmem:[%s8 + $0x38] sm:$0xf] %v1016
    %1033 = vst [vmem:[%s8 + $0x3c] sm:$0xf] %v1017
    %1034 = vst [vmem:[%s7] sm:$0xff] %v970
    %1035 = vst [vmem:[%s7 + $0x8] sm:$0xff] %v971
    %1036 = vst [vmem:[%s7 + $0x10] sm:$0xff] %v972
    %1037 = vst [vmem:[%s7 + $0x18] sm:$0xff] %v973
    %1038 = vst [vmem:[%s7 + $0x20] sm:$0xff] %v974
    %1039 = vst [vmem:[%s7 + $0x28] sm:$0xff] %v975
    %1040 = vst [vmem:[%s7 + $0x30] sm:$0xff] %v976
    %1041 = vst [vmem:[%s7 + $0x38] sm:$0xff] %v977
    %1042 = vst [vmem:[%s7 + $0x40] sm:$0xff] %v978
    %1043 = vst [vmem:[%s7 + $0x48] sm:$0xff] %v979
    %1044 = vst [vmem:[%s7 + $0x50] sm:$0xff] %v980
    %1045 = vst [vmem:[%s7 + $0x58] sm:$0xff] %v981
    %1046 = vst [vmem:[%s7 + $0x60] sm:$0xff] %v982
    %1047 = vst [vmem:[%s7 + $0x68] sm:$0xff] %v983
    %1048 = vst [vmem:[%s7 + $0x70] sm:$0xff] %v984
    %1049 = vst [vmem:[%s7 + $0x78] sm:$0xff] %v985
  $region37: #{graphsage_forward.2} parent=0 // pred_fallthru
    _
  // Predicated region
  $region38: #{graphsage_forward.2} parent=0 // pred_check
    _
  $region39: #{graphsage_forward.2} parent=0 // pred_check_branch
    %1051 = sbr.rel (0) target = $region41
  $region40: #{graphsage_forward.2} parent=0 // pred_region
    _
  $region41: #{graphsage_forward.2} parent=0 // pred_fallthru
    _
  // Predicated region
  $region42: #{graphsage_forward.2} parent=0 // pred_check
    _
  $region43: #{graphsage_forward.2} parent=0 // pred_check_branch
    %1053 = sbr.rel (0) target = $region45
  $region44: #{graphsage_forward.2} parent=0 // pred_region
    _
  $region45: #{graphsage_forward.2} parent=0 // pred_fallthru
    _
  // Predicated region
  $region46: #{graphsage_forward.2} parent=0 // pred_check
    _
  $region47: #{graphsage_forward.2} parent=0 // pred_check_branch
    %1055 = sbr.rel (0) target = $region49
  $region48: #{graphsage_forward.2} parent=0 // pred_region
    _
  $region49: #{graphsage_forward.2} parent=0 // pred_fallthru
    _
  // Predicated region
  $region50: #{graphsage_forward.2} parent=0 // pred_check
    _
  $region51: #{graphsage_forward.2} parent=0 // pred_check_branch
    %1057 = sbr.rel (0) target = $region53
  $region52: #{graphsage_forward.2} parent=0 // pred_region
    _
  $region53: #{graphsage_forward.2} parent=0 // pred_fallthru
    _

// kernel: graphsage_forward.3
$region0: #{graphsage_forward.3}
  #allocation0 [shape = 'u32[]', space=smem, size = 0x4, offset = 0x4, fixed_abs, tag = 'smem constant byte address 0x4 - core index']
  #allocation1 [shape = 'u32[72,128]{1,0:T(1,128)}', space=vmem, size = 0x9000, scoped, tag = 'internal scratch']
  #allocation2 [shape = 'f32[128,128]{1,0:T(8,128)}', space=vmem, size = 0x10000, scoped, tag = 'scratch operand']
  %s0 = inlined_call_operand.vmem [shape: s8[128,128], index: 0, kind: input, shape index: {}]
  %s1 = inlined_call_operand.vmem [shape: bf16[128,128], index: 1, kind: input, shape index: {}, may-alias: {1,2}]
  %s2 = inlined_call_operand.vmem [shape: bf16[128,128], index: 2, kind: input, shape index: {}, may-alias: {1,2}]
  %s3 = inlined_call_operand.vmem [shape: f32[128,1], index: 3, kind: input, shape index: {}]
  %s4 = inlined_call_operand.vmem [shape: bf16[128,128], index: 4, kind: input, shape index: {}]
  %s5 = inlined_call_operand.vmem [shape: bf16[128,128], index: 5, kind: input, shape index: {}]
  %s6 = inlined_call_operand.vmem [shape: f32[1,128], index: 6, kind: input, shape index: {}]
  %s7 = inlined_call_operand.vmem [shape: f32[128,128], index: 7, kind: output, shape index: {}]
  %s8 = sld [smem:[#allocation0]]
  $region46: #{graphsage_forward.3} parent=0
    _
  %s10 = ssub.s32 1, %s8
  %s11 = scalar_select 0, %s10, %s8
  // Predicated region
  $region2: #{graphsage_forward.3} parent=0 // pred_check
    _
  $region3: #{graphsage_forward.3} parent=0 // pred_check_branch
    %13 = sbr.rel (0) target = $region5
  $region4: #{graphsage_forward.3} parent=0 // pred_region
    _
  $region5: #{graphsage_forward.3} parent=0 // pred_fallthru
    _
  // Predicated region
  $region6: #{graphsage_forward.3} parent=0 // pred_check
    _
  $region7: #{graphsage_forward.3} parent=0 // pred_check_branch
    %15 = sbr.rel (0) target = $region9
  $region8: #{graphsage_forward.3} parent=0 // pred_region
    _
  $region9: #{graphsage_forward.3} parent=0 // pred_fallthru
    _
  // Predicated region
  $region10: #{graphsage_forward.3} parent=0 // pred_check
    _
  $region11: #{graphsage_forward.3} parent=0 // pred_check_branch
    %17 = sbr.rel (0) target = $region13
  $region12: #{graphsage_forward.3} parent=0 // pred_region
    _
  $region13: #{graphsage_forward.3} parent=0 // pred_fallthru
    _
  // Predicated region
  $region14: #{graphsage_forward.3} parent=0 // pred_check
    _
  $region15: #{graphsage_forward.3} parent=0 // pred_check_branch
    %19 = sbr.rel (0) target = $region17
  $region16: #{graphsage_forward.3} parent=0 // pred_region
    _
  $region17: #{graphsage_forward.3} parent=0 // pred_fallthru
    _
  // Predicated region
  $region18: #{graphsage_forward.3} parent=0 // pred_check
    _
  $region19: #{graphsage_forward.3} parent=0 // pred_check_branch
    %21 = sbr.rel (0) target = $region21
  $region20: #{graphsage_forward.3} parent=0 // pred_region
    _
  $region21: #{graphsage_forward.3} parent=0 // pred_fallthru
    _
  // Predicated region
  $region22: #{graphsage_forward.3} parent=0 // pred_check
    _
  $region23: #{graphsage_forward.3} parent=0 // pred_check_branch
    %23 = sbr.rel (0) target = $region25
  $region24: #{graphsage_forward.3} parent=0 // pred_region
    _
  $region25: #{graphsage_forward.3} parent=0 // pred_fallthru
    _
  // Predicated region
  $region26: #{graphsage_forward.3} parent=0 // pred_check
    _
  $region27: #{graphsage_forward.3} parent=0 // pred_check_branch
    %25 = sbr.rel (0) target = $region29
  $region28: #{graphsage_forward.3} parent=0 // pred_region
    _
  $region29: #{graphsage_forward.3} parent=0 // pred_fallthru
    _
  %p26 = scmp.eq.s32.totalorder 0, 0
  // Predicated region
  $region30: #{graphsage_forward.3} parent=0 // pred_check
    %p27 = pneg %p26
  $region31: #{graphsage_forward.3} parent=0 // pred_check_branch
    %29 = sbr.rel (%p27) target = $region33
  $region32: #{graphsage_forward.3} parent=0 // pred_region
    %30 = vst [vmem:[#allocation2] sm:$0xff] 0.0
    %31 = vst [vmem:[#allocation2 + $0x8] sm:$0xff] 0.0
    %32 = vst [vmem:[#allocation2 + $0x10] sm:$0xff] 0.0
    %33 = vst [vmem:[#allocation2 + $0x18] sm:$0xff] 0.0
    %34 = vst [vmem:[#allocation2 + $0x20] sm:$0xff] 0.0
    %35 = vst [vmem:[#allocation2 + $0x28] sm:$0xff] 0.0
    %36 = vst [vmem:[#allocation2 + $0x30] sm:$0xff] 0.0
    %37 = vst [vmem:[#allocation2 + $0x38] sm:$0xff] 0.0
    %38 = vst [vmem:[#allocation2 + $0x40] sm:$0xff] 0.0
    %39 = vst [vmem:[#allocation2 + $0x48] sm:$0xff] 0.0
    %40 = vst [vmem:[#allocation2 + $0x50] sm:$0xff] 0.0
    %41 = vst [vmem:[#allocation2 + $0x58] sm:$0xff] 0.0
    %42 = vst [vmem:[#allocation2 + $0x60] sm:$0xff] 0.0
    %43 = vst [vmem:[#allocation2 + $0x68] sm:$0xff] 0.0
    %44 = vst [vmem:[#allocation2 + $0x70] sm:$0xff] 0.0
    %45 = vst [vmem:[#allocation2 + $0x78] sm:$0xff] 0.0
  $region33: #{graphsage_forward.3} parent=0 // pred_fallthru
    _
  %v46 = vld [vmem:[#allocation2] sm:$0xff]
  %v47 = vld [vmem:[#allocation2 + $0x8] sm:$0xff]
  %v48 = vld [vmem:[#allocation2 + $0x10] sm:$0xff]
  %v49 = vld [vmem:[#allocation2 + $0x18] sm:$0xff]
  %v50 = vld [vmem:[#allocation2 + $0x20] sm:$0xff]
  %v51 = vld [vmem:[#allocation2 + $0x28] sm:$0xff]
  %v52 = vld [vmem:[#allocation2 + $0x30] sm:$0xff]
  %v53 = vld [vmem:[#allocation2 + $0x38] sm:$0xff]
  %v54 = vld [vmem:[#allocation2 + $0x40] sm:$0xff]
  %v55 = vld [vmem:[#allocation2 + $0x48] sm:$0xff]
  %v56 = vld [vmem:[#allocation2 + $0x50] sm:$0xff]
  %v57 = vld [vmem:[#allocation2 + $0x58] sm:$0xff]
  %v58 = vld [vmem:[#allocation2 + $0x60] sm:$0xff]
  %v59 = vld [vmem:[#allocation2 + $0x68] sm:$0xff]
  %v60 = vld [vmem:[#allocation2 + $0x70] sm:$0xff]
  %v61 = vld [vmem:[#allocation2 + $0x78] sm:$0xff]
  %v62 = vld [vmem:[%s0] sm:$0x3]
  %v63 = vld [vmem:[%s0 + $0x2] sm:$0x3]
  %v64 = vld [vmem:[%s0 + $0x4] sm:$0x3]
  %v65 = vld [vmem:[%s0 + $0x6] sm:$0x3]
  %v66 = vld [vmem:[%s0 + $0x8] sm:$0x3]
  %v67 = vld [vmem:[%s0 + $0xa] sm:$0x3]
  %v68 = vld [vmem:[%s0 + $0xc] sm:$0x3]
  %v69 = vld [vmem:[%s0 + $0xe] sm:$0x3]
  %v70 = vld [vmem:[%s0 + $0x10] sm:$0x3]
  %v71 = vld [vmem:[%s0 + $0x12] sm:$0x3]
  %v72 = vld [vmem:[%s0 + $0x14] sm:$0x3]
  %v73 = vld [vmem:[%s0 + $0x16] sm:$0x3]
  %v74 = vld [vmem:[%s0 + $0x18] sm:$0x3]
  %v75 = vld [vmem:[%s0 + $0x1a] sm:$0x3]
  %v76 = vld [vmem:[%s0 + $0x1c] sm:$0x3]
  %v77 = vld [vmem:[%s0 + $0x1e] sm:$0x3]
  %v78 = vunpack.c.0.s8 %v62
  %v79 = vunpack.c.0.s8 %v63
  %v80 = vunpack.c.0.s8 %v64
  %v81 = vunpack.c.0.s8 %v65
  %v82 = vunpack.c.0.s8 %v66
  %v83 = vunpack.c.0.s8 %v67
  %v84 = vunpack.c.0.s8 %v68
  %v85 = vunpack.c.0.s8 %v69
  %v86 = vunpack.c.0.s8 %v70
  %v87 = vunpack.c.0.s8 %v71
  %v88 = vunpack.c.0.s8 %v72
  %v89 = vunpack.c.0.s8 %v73
  %v90 = vunpack.c.0.s8 %v74
  %v91 = vunpack.c.0.s8 %v75
  %v92 = vunpack.c.0.s8 %v76
  %v93 = vunpack.c.0.s8 %v77
  %v94 = vcvt.s32.f32 %v78
  %v95 = vcvt.s32.f32 %v79
  %v96 = vcvt.s32.f32 %v80
  %v97 = vcvt.s32.f32 %v81
  %v98 = vcvt.s32.f32 %v82
  %v99 = vcvt.s32.f32 %v83
  %v100 = vcvt.s32.f32 %v84
  %v101 = vcvt.s32.f32 %v85
  %v102 = vcvt.s32.f32 %v86
  %v103 = vcvt.s32.f32 %v87
  %v104 = vcvt.s32.f32 %v88
  %v105 = vcvt.s32.f32 %v89
  %v106 = vcvt.s32.f32 %v90
  %v107 = vcvt.s32.f32 %v91
  %v108 = vcvt.s32.f32 %v92
  %v109 = vcvt.s32.f32 %v93
  %v110 = vpack.c.bf16 %v95, %v94
  %v111 = vpack.c.bf16 %v97, %v96
  %v112 = vpack.c.bf16 %v99, %v98
  %v113 = vpack.c.bf16 %v101, %v100
  %v114 = vpack.c.bf16 %v103, %v102
  %v115 = vpack.c.bf16 %v105, %v104
  %v116 = vpack.c.bf16 %v107, %v106
  %v117 = vpack.c.bf16 %v109, %v108
  %v118 = vld [vmem:[%s1] sm:$0xf]
  %v119 = vld [vmem:[%s1 + $0x4] sm:$0xf]
  %v120 = vld [vmem:[%s1 + $0x8] sm:$0xf]
  %v121 = vld [vmem:[%s1 + $0xc] sm:$0xf]
  %v122 = vld [vmem:[%s1 + $0x10] sm:$0xf]
  %v123 = vld [vmem:[%s1 + $0x14] sm:$0xf]
  %v124 = vld [vmem:[%s1 + $0x18] sm:$0xf]
  %v125 = vld [vmem:[%s1 + $0x1c] sm:$0xf]
  %v126 = vld [vmem:[%s1 + $0x20] sm:$0xf]
  %v127 = vld [vmem:[%s1 + $0x24] sm:$0xf]
  %v128 = vld [vmem:[%s1 + $0x28] sm:$0xf]
  %v129 = vld [vmem:[%s1 + $0x2c] sm:$0xf]
  %v130 = vld [vmem:[%s1 + $0x30] sm:$0xf]
  %v131 = vld [vmem:[%s1 + $0x34] sm:$0xf]
  %v132 = vld [vmem:[%s1 + $0x38] sm:$0xf]
  %v133 = vld [vmem:[%s1 + $0x3c] sm:$0xf]
  %v150 = vunpack.c.l.b16 %v118
  %v151 = vunpack.c.l.b16 %v119
  %v152 = vunpack.c.l.b16 %v120
  %v153 = vunpack.c.l.b16 %v121
  %v154 = vunpack.c.l.b16 %v122
  %v155 = vunpack.c.l.b16 %v123
  %v156 = vunpack.c.l.b16 %v124
  %v157 = vunpack.c.l.b16 %v125
  %v158 = vunpack.c.l.b16 %v126
  %v159 = vunpack.c.l.b16 %v127
  %v160 = vunpack.c.l.b16 %v128
  %v161 = vunpack.c.l.b16 %v129
  %v162 = vunpack.c.l.b16 %v130
  %v163 = vunpack.c.l.b16 %v131
  %v164 = vunpack.c.l.b16 %v132
  %v165 = vunpack.c.l.b16 %v133
  %v166 = vpack.c.b16 %v151, %v150
  %v167 = vpack.c.b16 %v153, %v152
  %v168 = vpack.c.b16 %v155, %v154
  %v169 = vpack.c.b16 %v157, %v156
  %v170 = vpack.c.b16 %v159, %v158
  %v171 = vpack.c.b16 %v161, %v160
  %v172 = vpack.c.b16 %v163, %v162
  %v173 = vpack.c.b16 %v165, %v164
  %182 = vmatpush.bf16.msra.mxu0 %v173
  %183 = vmatpush.bf16.msra.mxu0 %v172
  %184 = vmatpush.bf16.msra.mxu0 %v171
  %185 = vmatpush.bf16.msra.mxu0 %v170
  %186 = vmatpush.bf16.msra.mxu0 %v169
  %187 = vmatpush.bf16.msra.mxu0 %v168
  %188 = vmatpush.bf16.msra.mxu0 %v167
  %189 = vmatpush.bf16.msra.mxu0 %v166
  %190 = vmatmul.bf16.gmra.mxu0 %v110
  %v191 = vpop.f32.mrf.mxu0
  %v192 = vadd.f32 0.0, %v191
  %v193 = vpop.f32.mrf.mxu0
  %v194 = vadd.f32 0.0, %v193
  %195 = vmatmul.bf16.gmra.mxu0 %v111
  %v196 = vpop.f32.mrf.mxu0
  %v197 = vadd.f32 0.0, %v196
  %v198 = vpop.f32.mrf.mxu0
  %v199 = vadd.f32 0.0, %v198
  %200 = vmatmul.bf16.gmra.mxu0 %v112
  %v201 = vpop.f32.mrf.mxu0
  %v202 = vadd.f32 0.0, %v201
  %v203 = vpop.f32.mrf.mxu0
  %v204 = vadd.f32 0.0, %v203
  %205 = vmatmul.bf16.gmra.mxu0 %v113
  %v206 = vpop.f32.mrf.mxu0
  %v207 = vadd.f32 0.0, %v206
  %v208 = vpop.f32.mrf.mxu0
  %v209 = vadd.f32 0.0, %v208
  %210 = vmatmul.bf16.gmra.mxu0 %v114
  %v211 = vpop.f32.mrf.mxu0
  %v212 = vadd.f32 0.0, %v211
  %v213 = vpop.f32.mrf.mxu0
  %v214 = vadd.f32 0.0, %v213
  %215 = vmatmul.bf16.gmra.mxu0 %v115
  %v216 = vpop.f32.mrf.mxu0
  %v217 = vadd.f32 0.0, %v216
  %v218 = vpop.f32.mrf.mxu0
  %v219 = vadd.f32 0.0, %v218
  %220 = vmatmul.bf16.gmra.mxu0 %v116
  %v221 = vpop.f32.mrf.mxu0
  %v222 = vadd.f32 0.0, %v221
  %v223 = vpop.f32.mrf.mxu0
  %v224 = vadd.f32 0.0, %v223
  %225 = vmatmul.bf16.gmra.mxu0 %v117
  %v226 = vpop.f32.mrf.mxu0
  %v227 = vadd.f32 0.0, %v226
  %v228 = vpop.f32.mrf.mxu0
  %v229 = vadd.f32 0.0, %v228
  %230 = vdwg.mxu0
  %v231 = vadd.f32 %v46, %v192
  %v232 = vadd.f32 %v47, %v194
  %v233 = vadd.f32 %v48, %v197
  %v234 = vadd.f32 %v49, %v199
  %v235 = vadd.f32 %v50, %v202
  %v236 = vadd.f32 %v51, %v204
  %v237 = vadd.f32 %v52, %v207
  %v238 = vadd.f32 %v53, %v209
  %v239 = vadd.f32 %v54, %v212
  %v240 = vadd.f32 %v55, %v214
  %v241 = vadd.f32 %v56, %v217
  %v242 = vadd.f32 %v57, %v219
  %v243 = vadd.f32 %v58, %v222
  %v244 = vadd.f32 %v59, %v224
  %v245 = vadd.f32 %v60, %v227
  %v246 = vadd.f32 %v61, %v229
  %247 = vst [vmem:[#allocation2] sm:$0xff] %v231
  %248 = vst [vmem:[#allocation2 + $0x8] sm:$0xff] %v232
  %249 = vst [vmem:[#allocation2 + $0x10] sm:$0xff] %v233
  %250 = vst [vmem:[#allocation2 + $0x18] sm:$0xff] %v234
  %251 = vst [vmem:[#allocation2 + $0x20] sm:$0xff] %v235
  %252 = vst [vmem:[#allocation2 + $0x28] sm:$0xff] %v236
  %253 = vst [vmem:[#allocation2 + $0x30] sm:$0xff] %v237
  %254 = vst [vmem:[#allocation2 + $0x38] sm:$0xff] %v238
  %255 = vst [vmem:[#allocation2 + $0x40] sm:$0xff] %v239
  %256 = vst [vmem:[#allocation2 + $0x48] sm:$0xff] %v240
  %257 = vst [vmem:[#allocation2 + $0x50] sm:$0xff] %v241
  %258 = vst [vmem:[#allocation2 + $0x58] sm:$0xff] %v242
  %259 = vst [vmem:[#allocation2 + $0x60] sm:$0xff] %v243
  %260 = vst [vmem:[#allocation2 + $0x68] sm:$0xff] %v244
  %261 = vst [vmem:[#allocation2 + $0x70] sm:$0xff] %v245
  %262 = vst [vmem:[#allocation2 + $0x78] sm:$0xff] %v246
  // Predicated region
  $region34: #{graphsage_forward.3} parent=0 // pred_check
    %p263 = pneg %p26
  $region35: #{graphsage_forward.3} parent=0 // pred_check_branch
    %265 = sbr.rel (%p263) target = $region37
  $region36: #{graphsage_forward.3} parent=0 // pred_region
    %v266 = vld [vmem:[%s3] sm:$0xff]
    %v267 = vld [vmem:[%s3 + $0x8] sm:$0xff]
    %v268 = vld [vmem:[%s3 + $0x10] sm:$0xff]
    %v269 = vld [vmem:[%s3 + $0x18] sm:$0xff]
    %v270 = vld [vmem:[%s3 + $0x20] sm:$0xff]
    %v271 = vld [vmem:[%s3 + $0x28] sm:$0xff]
    %v272 = vld [vmem:[%s3 + $0x30] sm:$0xff]
    %v273 = vld [vmem:[%s3 + $0x38] sm:$0xff]
    %v274 = vld [vmem:[%s3 + $0x40] sm:$0xff]
    %v275 = vld [vmem:[%s3 + $0x48] sm:$0xff]
    %v276 = vld [vmem:[%s3 + $0x50] sm:$0xff]
    %v277 = vld [vmem:[%s3 + $0x58] sm:$0xff]
    %v278 = vld [vmem:[%s3 + $0x60] sm:$0xff]
    %v279 = vld [vmem:[%s3 + $0x68] sm:$0xff]
    %v280 = vld [vmem:[%s3 + $0x70] sm:$0xff]
    %v281 = vld [vmem:[%s3 + $0x78] sm:$0xff]
    %v282 = vmax.f32 %v266, 1.0
    %v283 = vmax.f32 %v267, 1.0
    %v284 = vmax.f32 %v268, 1.0
    %v285 = vmax.f32 %v269, 1.0
    %v286 = vmax.f32 %v270, 1.0
    %v287 = vmax.f32 %v271, 1.0
    %v288 = vmax.f32 %v272, 1.0
    %v289 = vmax.f32 %v273, 1.0
    %v290 = vmax.f32 %v274, 1.0
    %v291 = vmax.f32 %v275, 1.0
    %v292 = vmax.f32 %v276, 1.0
    %v293 = vmax.f32 %v277, 1.0
    %v294 = vmax.f32 %v278, 1.0
    %v295 = vmax.f32 %v279, 1.0
    %v296 = vmax.f32 %v280, 1.0
    %v297 = vmax.f32 %v281, 1.0
    %v298 = vrcp.pop %v282
    %v299 = vrcp.pop %v283
    %v300 = vrcp.pop %v284
    %v301 = vrcp.pop %v285
    %v302 = vrcp.pop %v286
    %v303 = vrcp.pop %v287
    %v304 = vrcp.pop %v288
    %v305 = vrcp.pop %v289
    %v306 = vrcp.pop %v290
    %v307 = vrcp.pop %v291
    %v308 = vrcp.pop %v292
    %v309 = vrcp.pop %v293
    %v310 = vrcp.pop %v294
    %v311 = vrcp.pop %v295
    %v312 = vrcp.pop %v296
    %v313 = vrcp.pop %v297
    %v314 = vld [vmem:[#allocation2] sm:$0xff]
    %v315 = vld [vmem:[#allocation2 + $0x8] sm:$0xff]
    %v316 = vld [vmem:[#allocation2 + $0x10] sm:$0xff]
    %v317 = vld [vmem:[#allocation2 + $0x18] sm:$0xff]
    %v318 = vld [vmem:[#allocation2 + $0x20] sm:$0xff]
    %v319 = vld [vmem:[#allocation2 + $0x28] sm:$0xff]
    %v320 = vld [vmem:[#allocation2 + $0x30] sm:$0xff]
    %v321 = vld [vmem:[#allocation2 + $0x38] sm:$0xff]
    %v322 = vld [vmem:[#allocation2 + $0x40] sm:$0xff]
    %v323 = vld [vmem:[#allocation2 + $0x48] sm:$0xff]
    %v324 = vld [vmem:[#allocation2 + $0x50] sm:$0xff]
    %v325 = vld [vmem:[#allocation2 + $0x58] sm:$0xff]
    %v326 = vld [vmem:[#allocation2 + $0x60] sm:$0xff]
    %v327 = vld [vmem:[#allocation2 + $0x68] sm:$0xff]
    %v328 = vld [vmem:[#allocation2 + $0x70] sm:$0xff]
    %v329 = vld [vmem:[#allocation2 + $0x78] sm:$0xff]
    %331 = vset.pattern.permute.xlu0 0
    %332 = vperm.xlu0 %331, %v298
    %v333 = vpop.permute.xlu0 %332
    %336 = vset.pattern.permute.xlu0 0
    %337 = vperm.xlu0 %336, %v299
    %v338 = vpop.permute.xlu0 %337
    %341 = vset.pattern.permute.xlu0 0
    %342 = vperm.xlu0 %341, %v300
    %v343 = vpop.permute.xlu0 %342
    %346 = vset.pattern.permute.xlu0 0
    %347 = vperm.xlu0 %346, %v301
    %v348 = vpop.permute.xlu0 %347
    %351 = vset.pattern.permute.xlu0 0
    %352 = vperm.xlu0 %351, %v302
    %v353 = vpop.permute.xlu0 %352
    %356 = vset.pattern.permute.xlu0 0
    %357 = vperm.xlu0 %356, %v303
    %v358 = vpop.permute.xlu0 %357
    %361 = vset.pattern.permute.xlu0 0
    %362 = vperm.xlu0 %361, %v304
    %v363 = vpop.permute.xlu0 %362
    %366 = vset.pattern.permute.xlu0 0
    %367 = vperm.xlu0 %366, %v305
    %v368 = vpop.permute.xlu0 %367
    %371 = vset.pattern.permute.xlu0 0
    %372 = vperm.xlu0 %371, %v306
    %v373 = vpop.permute.xlu0 %372
    %376 = vset.pattern.permute.xlu0 0
    %377 = vperm.xlu0 %376, %v307
    %v378 = vpop.permute.xlu0 %377
    %381 = vset.pattern.permute.xlu0 0
    %382 = vperm.xlu0 %381, %v308
    %v383 = vpop.permute.xlu0 %382
    %386 = vset.pattern.permute.xlu0 0
    %387 = vperm.xlu0 %386, %v309
    %v388 = vpop.permute.xlu0 %387
    %391 = vset.pattern.permute.xlu0 0
    %392 = vperm.xlu0 %391, %v310
    %v393 = vpop.permute.xlu0 %392
    %396 = vset.pattern.permute.xlu0 0
    %397 = vperm.xlu0 %396, %v311
    %v398 = vpop.permute.xlu0 %397
    %401 = vset.pattern.permute.xlu0 0
    %402 = vperm.xlu0 %401, %v312
    %v403 = vpop.permute.xlu0 %402
    %406 = vset.pattern.permute.xlu0 0
    %407 = vperm.xlu0 %406, %v313
    %v408 = vpop.permute.xlu0 %407
    %v410 = vmul.f32 %v314, %v333
    %v411 = vmul.f32 %v315, %v338
    %v412 = vmul.f32 %v316, %v343
    %v413 = vmul.f32 %v317, %v348
    %v414 = vmul.f32 %v318, %v353
    %v415 = vmul.f32 %v319, %v358
    %v416 = vmul.f32 %v320, %v363
    %v417 = vmul.f32 %v321, %v368
    %v418 = vmul.f32 %v322, %v373
    %v419 = vmul.f32 %v323, %v378
    %v420 = vmul.f32 %v324, %v383
    %v421 = vmul.f32 %v325, %v388
    %v422 = vmul.f32 %v326, %v393
    %v423 = vmul.f32 %v327, %v398
    %v424 = vmul.f32 %v328, %v403
    %v425 = vmul.f32 %v329, %v408
    %v426 = vpack.c.bf16 %v411, %v410
    %v427 = vpack.c.bf16 %v413, %v412
    %v428 = vpack.c.bf16 %v415, %v414
    %v429 = vpack.c.bf16 %v417, %v416
    %v430 = vpack.c.bf16 %v419, %v418
    %v431 = vpack.c.bf16 %v421, %v420
    %v432 = vpack.c.bf16 %v423, %v422
    %v433 = vpack.c.bf16 %v425, %v424
    %v434 = vld [vmem:[%s4] sm:$0xf]
    %v435 = vld [vmem:[%s4 + $0x4] sm:$0xf]
    %v436 = vld [vmem:[%s4 + $0x8] sm:$0xf]
    %v437 = vld [vmem:[%s4 + $0xc] sm:$0xf]
    %v438 = vld [vmem:[%s4 + $0x10] sm:$0xf]
    %v439 = vld [vmem:[%s4 + $0x14] sm:$0xf]
    %v440 = vld [vmem:[%s4 + $0x18] sm:$0xf]
    %v441 = vld [vmem:[%s4 + $0x1c] sm:$0xf]
    %v442 = vld [vmem:[%s4 + $0x20] sm:$0xf]
    %v443 = vld [vmem:[%s4 + $0x24] sm:$0xf]
    %v444 = vld [vmem:[%s4 + $0x28] sm:$0xf]
    %v445 = vld [vmem:[%s4 + $0x2c] sm:$0xf]
    %v446 = vld [vmem:[%s4 + $0x30] sm:$0xf]
    %v447 = vld [vmem:[%s4 + $0x34] sm:$0xf]
    %v448 = vld [vmem:[%s4 + $0x38] sm:$0xf]
    %v449 = vld [vmem:[%s4 + $0x3c] sm:$0xf]
    %v450 = vld [vmem:[%s2] sm:$0xf]
    %v451 = vld [vmem:[%s2 + $0x4] sm:$0xf]
    %v452 = vld [vmem:[%s2 + $0x8] sm:$0xf]
    %v453 = vld [vmem:[%s2 + $0xc] sm:$0xf]
    %v454 = vld [vmem:[%s2 + $0x10] sm:$0xf]
    %v455 = vld [vmem:[%s2 + $0x14] sm:$0xf]
    %v456 = vld [vmem:[%s2 + $0x18] sm:$0xf]
    %v457 = vld [vmem:[%s2 + $0x1c] sm:$0xf]
    %v458 = vld [vmem:[%s2 + $0x20] sm:$0xf]
    %v459 = vld [vmem:[%s2 + $0x24] sm:$0xf]
    %v460 = vld [vmem:[%s2 + $0x28] sm:$0xf]
    %v461 = vld [vmem:[%s2 + $0x2c] sm:$0xf]
    %v462 = vld [vmem:[%s2 + $0x30] sm:$0xf]
    %v463 = vld [vmem:[%s2 + $0x34] sm:$0xf]
    %v464 = vld [vmem:[%s2 + $0x38] sm:$0xf]
    %v465 = vld [vmem:[%s2 + $0x3c] sm:$0xf]
    %v466 = vld [vmem:[%s5] sm:$0xf]
    %v467 = vld [vmem:[%s5 + $0x4] sm:$0xf]
    %v468 = vld [vmem:[%s5 + $0x8] sm:$0xf]
    %v469 = vld [vmem:[%s5 + $0xc] sm:$0xf]
    %v470 = vld [vmem:[%s5 + $0x10] sm:$0xf]
    %v471 = vld [vmem:[%s5 + $0x14] sm:$0xf]
    %v472 = vld [vmem:[%s5 + $0x18] sm:$0xf]
    %v473 = vld [vmem:[%s5 + $0x1c] sm:$0xf]
    %v474 = vld [vmem:[%s5 + $0x20] sm:$0xf]
    %v475 = vld [vmem:[%s5 + $0x24] sm:$0xf]
    %v476 = vld [vmem:[%s5 + $0x28] sm:$0xf]
    %v477 = vld [vmem:[%s5 + $0x2c] sm:$0xf]
    %v478 = vld [vmem:[%s5 + $0x30] sm:$0xf]
    %v479 = vld [vmem:[%s5 + $0x34] sm:$0xf]
    %v480 = vld [vmem:[%s5 + $0x38] sm:$0xf]
    %v481 = vld [vmem:[%s5 + $0x3c] sm:$0xf]
    %v498 = vunpack.c.l.b16 %v450
    %v499 = vunpack.c.l.b16 %v451
    %v500 = vunpack.c.l.b16 %v452
    %v501 = vunpack.c.l.b16 %v453
    %v502 = vunpack.c.l.b16 %v454
    %v503 = vunpack.c.l.b16 %v455
    %v504 = vunpack.c.l.b16 %v456
    %v505 = vunpack.c.l.b16 %v457
    %v506 = vunpack.c.l.b16 %v458
    %v507 = vunpack.c.l.b16 %v459
    %v508 = vunpack.c.l.b16 %v460
    %v509 = vunpack.c.l.b16 %v461
    %v510 = vunpack.c.l.b16 %v462
    %v511 = vunpack.c.l.b16 %v463
    %v512 = vunpack.c.l.b16 %v464
    %v513 = vunpack.c.l.b16 %v465
    %v514 = vpack.c.b16 %v499, %v498
    %v515 = vpack.c.b16 %v501, %v500
    %v516 = vpack.c.b16 %v503, %v502
    %v517 = vpack.c.b16 %v505, %v504
    %v518 = vpack.c.b16 %v507, %v506
    %v519 = vpack.c.b16 %v509, %v508
    %v520 = vpack.c.b16 %v511, %v510
    %v521 = vpack.c.b16 %v513, %v512
    %v546 = vunpack.c.l.b16 %v466
    %v547 = vunpack.c.l.b16 %v467
    %v548 = vunpack.c.l.b16 %v468
    %v549 = vunpack.c.l.b16 %v469
    %v550 = vunpack.c.l.b16 %v470
    %v551 = vunpack.c.l.b16 %v471
    %v552 = vunpack.c.l.b16 %v472
    %v553 = vunpack.c.l.b16 %v473
    %v554 = vunpack.c.l.b16 %v474
    %v555 = vunpack.c.l.b16 %v475
    %v556 = vunpack.c.l.b16 %v476
    %v557 = vunpack.c.l.b16 %v477
    %v558 = vunpack.c.l.b16 %v478
    %v559 = vunpack.c.l.b16 %v479
    %v560 = vunpack.c.l.b16 %v480
    %v561 = vunpack.c.l.b16 %v481
    %v562 = vpack.c.b16 %v547, %v546
    %v563 = vpack.c.b16 %v549, %v548
    %v564 = vpack.c.b16 %v551, %v550
    %v565 = vpack.c.b16 %v553, %v552
    %v566 = vpack.c.b16 %v555, %v554
    %v567 = vpack.c.b16 %v557, %v556
    %v568 = vpack.c.b16 %v559, %v558
    %v569 = vpack.c.b16 %v561, %v560
    %578 = vmatpush.bf16.msra.mxu0 %v569
    %579 = vmatpush.bf16.msra.mxu0 %v568
    %580 = vmatpush.bf16.msra.mxu0 %v567
    %581 = vmatpush.bf16.msra.mxu0 %v566
    %582 = vmatpush.bf16.msra.mxu0 %v565
    %583 = vmatpush.bf16.msra.mxu0 %v564
    %584 = vmatpush.bf16.msra.mxu0 %v563
    %585 = vmatpush.bf16.msra.mxu0 %v562
    %586 = vmatmul.bf16.gmra.mxu0 %v514
    %v587 = vpop.f32.mrf.mxu0
    %v588 = vadd.f32 0.0, %v587
    %v589 = vpop.f32.mrf.mxu0
    %v590 = vadd.f32 0.0, %v589
    %591 = vmatmul.bf16.gmra.mxu0 %v515
    %v592 = vpop.f32.mrf.mxu0
    %v593 = vadd.f32 0.0, %v592
    %v594 = vpop.f32.mrf.mxu0
    %v595 = vadd.f32 0.0, %v594
    %596 = vmatmul.bf16.gmra.mxu0 %v516
    %v597 = vpop.f32.mrf.mxu0
    %v598 = vadd.f32 0.0, %v597
    %v599 = vpop.f32.mrf.mxu0
    %v600 = vadd.f32 0.0, %v599
    %601 = vmatmul.bf16.gmra.mxu0 %v517
    %v602 = vpop.f32.mrf.mxu0
    %v603 = vadd.f32 0.0, %v602
    %v604 = vpop.f32.mrf.mxu0
    %v605 = vadd.f32 0.0, %v604
    %606 = vmatmul.bf16.gmra.mxu0 %v518
    %v607 = vpop.f32.mrf.mxu0
    %v608 = vadd.f32 0.0, %v607
    %v609 = vpop.f32.mrf.mxu0
    %v610 = vadd.f32 0.0, %v609
    %611 = vmatmul.bf16.gmra.mxu0 %v519
    %v612 = vpop.f32.mrf.mxu0
    %v613 = vadd.f32 0.0, %v612
    %v614 = vpop.f32.mrf.mxu0
    %v615 = vadd.f32 0.0, %v614
    %616 = vmatmul.bf16.gmra.mxu0 %v520
    %v617 = vpop.f32.mrf.mxu0
    %v618 = vadd.f32 0.0, %v617
    %v619 = vpop.f32.mrf.mxu0
    %v620 = vadd.f32 0.0, %v619
    %621 = vmatmul.bf16.gmra.mxu0 %v521
    %v622 = vpop.f32.mrf.mxu0
    %v623 = vadd.f32 0.0, %v622
    %v624 = vpop.f32.mrf.mxu0
    %v625 = vadd.f32 0.0, %v624
    %626 = vdwg.mxu0
    %v643 = vunpack.c.l.b16 %v434
    %v644 = vunpack.c.l.b16 %v435
    %v645 = vunpack.c.l.b16 %v436
    %v646 = vunpack.c.l.b16 %v437
    %v647 = vunpack.c.l.b16 %v438
    %v648 = vunpack.c.l.b16 %v439
    %v649 = vunpack.c.l.b16 %v440
    %v650 = vunpack.c.l.b16 %v441
    %v651 = vunpack.c.l.b16 %v442
    %v652 = vunpack.c.l.b16 %v443
    %v653 = vunpack.c.l.b16 %v444
    %v654 = vunpack.c.l.b16 %v445
    %v655 = vunpack.c.l.b16 %v446
    %v656 = vunpack.c.l.b16 %v447
    %v657 = vunpack.c.l.b16 %v448
    %v658 = vunpack.c.l.b16 %v449
    %v659 = vpack.c.b16 %v644, %v643
    %v660 = vpack.c.b16 %v646, %v645
    %v661 = vpack.c.b16 %v648, %v647
    %v662 = vpack.c.b16 %v650, %v649
    %v663 = vpack.c.b16 %v652, %v651
    %v664 = vpack.c.b16 %v654, %v653
    %v665 = vpack.c.b16 %v656, %v655
    %v666 = vpack.c.b16 %v658, %v657
    %675 = vmatpush.bf16.msra.mxu0 %v666
    %676 = vmatpush.bf16.msra.mxu0 %v665
    %677 = vmatpush.bf16.msra.mxu0 %v664
    %678 = vmatpush.bf16.msra.mxu0 %v663
    %679 = vmatpush.bf16.msra.mxu0 %v662
    %680 = vmatpush.bf16.msra.mxu0 %v661
    %681 = vmatpush.bf16.msra.mxu0 %v660
    %682 = vmatpush.bf16.msra.mxu0 %v659
    %683 = vmatmul.bf16.gmra.mxu0 %v426
    %v684 = vpop.f32.mrf.mxu0
    %v685 = vadd.f32 %v588, %v684
    %v686 = vpop.f32.mrf.mxu0
    %v687 = vadd.f32 %v590, %v686
    %688 = vmatmul.bf16.gmra.mxu0 %v427
    %v689 = vpop.f32.mrf.mxu0
    %v690 = vadd.f32 %v593, %v689
    %v691 = vpop.f32.mrf.mxu0
    %v692 = vadd.f32 %v595, %v691
    %693 = vmatmul.bf16.gmra.mxu0 %v428
    %v694 = vpop.f32.mrf.mxu0
    %v695 = vadd.f32 %v598, %v694
    %v696 = vpop.f32.mrf.mxu0
    %v697 = vadd.f32 %v600, %v696
    %698 = vmatmul.bf16.gmra.mxu0 %v429
    %v699 = vpop.f32.mrf.mxu0
    %v700 = vadd.f32 %v603, %v699
    %v701 = vpop.f32.mrf.mxu0
    %v702 = vadd.f32 %v605, %v701
    %703 = vmatmul.bf16.gmra.mxu0 %v430
    %v704 = vpop.f32.mrf.mxu0
    %v705 = vadd.f32 %v608, %v704
    %v706 = vpop.f32.mrf.mxu0
    %v707 = vadd.f32 %v610, %v706
    %708 = vmatmul.bf16.gmra.mxu0 %v431
    %v709 = vpop.f32.mrf.mxu0
    %v710 = vadd.f32 %v613, %v709
    %v711 = vpop.f32.mrf.mxu0
    %v712 = vadd.f32 %v615, %v711
    %713 = vmatmul.bf16.gmra.mxu0 %v432
    %v714 = vpop.f32.mrf.mxu0
    %v715 = vadd.f32 %v618, %v714
    %v716 = vpop.f32.mrf.mxu0
    %v717 = vadd.f32 %v620, %v716
    %718 = vmatmul.bf16.gmra.mxu0 %v433
    %v719 = vpop.f32.mrf.mxu0
    %v720 = vadd.f32 %v623, %v719
    %v721 = vpop.f32.mrf.mxu0
    %v722 = vadd.f32 %v625, %v721
    %723 = vdwg.mxu0
    %v724 = vld [vmem:[%s6] sm:$0x1]
    %v726 = vperm.slane %v724, 0
    %v728 = vadd.f32 %v685, %v726
    %v729 = vadd.f32 %v687, %v726
    %v730 = vadd.f32 %v690, %v726
    %v731 = vadd.f32 %v692, %v726
    %v732 = vadd.f32 %v695, %v726
    %v733 = vadd.f32 %v697, %v726
    %v734 = vadd.f32 %v700, %v726
    %v735 = vadd.f32 %v702, %v726
    %v736 = vadd.f32 %v705, %v726
    %v737 = vadd.f32 %v707, %v726
    %v738 = vadd.f32 %v710, %v726
    %v739 = vadd.f32 %v712, %v726
    %v740 = vadd.f32 %v715, %v726
    %v741 = vadd.f32 %v717, %v726
    %v742 = vadd.f32 %v720, %v726
    %v743 = vadd.f32 %v722, %v726
    %v744 = vmul.f32 %v728, %v728
    %v745 = vmul.f32 %v729, %v729
    %v746 = vmul.f32 %v730, %v730
    %v747 = vmul.f32 %v731, %v731
    %v748 = vmul.f32 %v732, %v732
    %v749 = vmul.f32 %v733, %v733
    %v750 = vmul.f32 %v734, %v734
    %v751 = vmul.f32 %v735, %v735
    %v752 = vmul.f32 %v736, %v736
    %v753 = vmul.f32 %v737, %v737
    %v754 = vmul.f32 %v738, %v738
    %v755 = vmul.f32 %v739, %v739
    %v756 = vmul.f32 %v740, %v740
    %v757 = vmul.f32 %v741, %v741
    %v758 = vmul.f32 %v742, %v742
    %v759 = vmul.f32 %v743, %v743
    %760 = vadd.xlane.f32.xlu0 %v744
    %v761 = vpop.xlane.xlu0 %760
    %762 = vadd.xlane.f32.xlu0 %v745
    %v763 = vpop.xlane.xlu0 %762
    %764 = vadd.xlane.f32.xlu0 %v746
    %v765 = vpop.xlane.xlu0 %764
    %766 = vadd.xlane.f32.xlu0 %v747
    %v767 = vpop.xlane.xlu0 %766
    %768 = vadd.xlane.f32.xlu0 %v748
    %v769 = vpop.xlane.xlu0 %768
    %770 = vadd.xlane.f32.xlu0 %v749
    %v771 = vpop.xlane.xlu0 %770
    %772 = vadd.xlane.f32.xlu0 %v750
    %v773 = vpop.xlane.xlu0 %772
    %774 = vadd.xlane.f32.xlu0 %v751
    %v775 = vpop.xlane.xlu0 %774
    %776 = vadd.xlane.f32.xlu0 %v752
    %v777 = vpop.xlane.xlu0 %776
    %778 = vadd.xlane.f32.xlu0 %v753
    %v779 = vpop.xlane.xlu0 %778
    %780 = vadd.xlane.f32.xlu0 %v754
    %v781 = vpop.xlane.xlu0 %780
    %782 = vadd.xlane.f32.xlu0 %v755
    %v783 = vpop.xlane.xlu0 %782
    %784 = vadd.xlane.f32.xlu0 %v756
    %v785 = vpop.xlane.xlu0 %784
    %786 = vadd.xlane.f32.xlu0 %v757
    %v787 = vpop.xlane.xlu0 %786
    %788 = vadd.xlane.f32.xlu0 %v758
    %v789 = vpop.xlane.xlu0 %788
    %790 = vadd.xlane.f32.xlu0 %v759
    %v791 = vpop.xlane.xlu0 %790
    %v792 = vmax.f32 %v761, 1e-24
    %v793 = vmax.f32 %v763, 1e-24
    %v794 = vmax.f32 %v765, 1e-24
    %v795 = vmax.f32 %v767, 1e-24
    %v796 = vmax.f32 %v769, 1e-24
    %v797 = vmax.f32 %v771, 1e-24
    %v798 = vmax.f32 %v773, 1e-24
    %v799 = vmax.f32 %v775, 1e-24
    %v800 = vmax.f32 %v777, 1e-24
    %v801 = vmax.f32 %v779, 1e-24
    %v802 = vmax.f32 %v781, 1e-24
    %v803 = vmax.f32 %v783, 1e-24
    %v804 = vmax.f32 %v785, 1e-24
    %v805 = vmax.f32 %v787, 1e-24
    %v806 = vmax.f32 %v789, 1e-24
    %v807 = vmax.f32 %v791, 1e-24
    %v808 = vrsqrt.pop %v792
    %v809 = vmul.f32 %v808, %v792
    %v810 = vmul.f32 %v809, %v808
    %v811 = vmul.f32 0.5, %v810
    %v812 = vsub.f32 1.5, %v811
    %v813 = vmul.f32 %v808, %v812
    %vm814 = vweird.f32 %v792
    %vm815 = vweird.f32 %v808
    %vm816 = vmor %vm814, %vm815
    %v817 = vsel %vm816, %v808, %v813
    %v818 = vrsqrt.pop %v793
    %v819 = vmul.f32 %v818, %v793
    %v820 = vmul.f32 %v819, %v818
    %v821 = vmul.f32 0.5, %v820
    %v822 = vsub.f32 1.5, %v821
    %v823 = vmul.f32 %v818, %v822
    %vm824 = vweird.f32 %v793
    %vm825 = vweird.f32 %v818
    %vm826 = vmor %vm824, %vm825
    %v827 = vsel %vm826, %v818, %v823
    %v828 = vrsqrt.pop %v794
    %v829 = vmul.f32 %v828, %v794
    %v830 = vmul.f32 %v829, %v828
    %v831 = vmul.f32 0.5, %v830
    %v832 = vsub.f32 1.5, %v831
    %v833 = vmul.f32 %v828, %v832
    %vm834 = vweird.f32 %v794
    %vm835 = vweird.f32 %v828
    %vm836 = vmor %vm834, %vm835
    %v837 = vsel %vm836, %v828, %v833
    %v838 = vrsqrt.pop %v795
    %v839 = vmul.f32 %v838, %v795
    %v840 = vmul.f32 %v839, %v838
    %v841 = vmul.f32 0.5, %v840
    %v842 = vsub.f32 1.5, %v841
    %v843 = vmul.f32 %v838, %v842
    %vm844 = vweird.f32 %v795
    %vm845 = vweird.f32 %v838
    %vm846 = vmor %vm844, %vm845
    %v847 = vsel %vm846, %v838, %v843
    %v848 = vrsqrt.pop %v796
    %v849 = vmul.f32 %v848, %v796
    %v850 = vmul.f32 %v849, %v848
    %v851 = vmul.f32 0.5, %v850
    %v852 = vsub.f32 1.5, %v851
    %v853 = vmul.f32 %v848, %v852
    %vm854 = vweird.f32 %v796
    %vm855 = vweird.f32 %v848
    %vm856 = vmor %vm854, %vm855
    %v857 = vsel %vm856, %v848, %v853
    %v858 = vrsqrt.pop %v797
    %v859 = vmul.f32 %v858, %v797
    %v860 = vmul.f32 %v859, %v858
    %v861 = vmul.f32 0.5, %v860
    %v862 = vsub.f32 1.5, %v861
    %v863 = vmul.f32 %v858, %v862
    %vm864 = vweird.f32 %v797
    %vm865 = vweird.f32 %v858
    %vm866 = vmor %vm864, %vm865
    %v867 = vsel %vm866, %v858, %v863
    %v868 = vrsqrt.pop %v798
    %v869 = vmul.f32 %v868, %v798
    %v870 = vmul.f32 %v869, %v868
    %v871 = vmul.f32 0.5, %v870
    %v872 = vsub.f32 1.5, %v871
    %v873 = vmul.f32 %v868, %v872
    %vm874 = vweird.f32 %v798
    %vm875 = vweird.f32 %v868
    %vm876 = vmor %vm874, %vm875
    %v877 = vsel %vm876, %v868, %v873
    %v878 = vrsqrt.pop %v799
    %v879 = vmul.f32 %v878, %v799
    %v880 = vmul.f32 %v879, %v878
    %v881 = vmul.f32 0.5, %v880
    %v882 = vsub.f32 1.5, %v881
    %v883 = vmul.f32 %v878, %v882
    %vm884 = vweird.f32 %v799
    %vm885 = vweird.f32 %v878
    %vm886 = vmor %vm884, %vm885
    %v887 = vsel %vm886, %v878, %v883
    %v888 = vrsqrt.pop %v800
    %v889 = vmul.f32 %v888, %v800
    %v890 = vmul.f32 %v889, %v888
    %v891 = vmul.f32 0.5, %v890
    %v892 = vsub.f32 1.5, %v891
    %v893 = vmul.f32 %v888, %v892
    %vm894 = vweird.f32 %v800
    %vm895 = vweird.f32 %v888
    %vm896 = vmor %vm894, %vm895
    %v897 = vsel %vm896, %v888, %v893
    %v898 = vrsqrt.pop %v801
    %v899 = vmul.f32 %v898, %v801
    %v900 = vmul.f32 %v899, %v898
    %v901 = vmul.f32 0.5, %v900
    %v902 = vsub.f32 1.5, %v901
    %v903 = vmul.f32 %v898, %v902
    %vm904 = vweird.f32 %v801
    %vm905 = vweird.f32 %v898
    %vm906 = vmor %vm904, %vm905
    %v907 = vsel %vm906, %v898, %v903
    %v908 = vrsqrt.pop %v802
    %v909 = vmul.f32 %v908, %v802
    %v910 = vmul.f32 %v909, %v908
    %v911 = vmul.f32 0.5, %v910
    %v912 = vsub.f32 1.5, %v911
    %v913 = vmul.f32 %v908, %v912
    %vm914 = vweird.f32 %v802
    %vm915 = vweird.f32 %v908
    %vm916 = vmor %vm914, %vm915
    %v917 = vsel %vm916, %v908, %v913
    %v918 = vrsqrt.pop %v803
    %v919 = vmul.f32 %v918, %v803
    %v920 = vmul.f32 %v919, %v918
    %v921 = vmul.f32 0.5, %v920
    %v922 = vsub.f32 1.5, %v921
    %v923 = vmul.f32 %v918, %v922
    %vm924 = vweird.f32 %v803
    %vm925 = vweird.f32 %v918
    %vm926 = vmor %vm924, %vm925
    %v927 = vsel %vm926, %v918, %v923
    %v928 = vrsqrt.pop %v804
    %v929 = vmul.f32 %v928, %v804
    %v930 = vmul.f32 %v929, %v928
    %v931 = vmul.f32 0.5, %v930
    %v932 = vsub.f32 1.5, %v931
    %v933 = vmul.f32 %v928, %v932
    %vm934 = vweird.f32 %v804
    %vm935 = vweird.f32 %v928
    %vm936 = vmor %vm934, %vm935
    %v937 = vsel %vm936, %v928, %v933
    %v938 = vrsqrt.pop %v805
    %v939 = vmul.f32 %v938, %v805
    %v940 = vmul.f32 %v939, %v938
    %v941 = vmul.f32 0.5, %v940
    %v942 = vsub.f32 1.5, %v941
    %v943 = vmul.f32 %v938, %v942
    %vm944 = vweird.f32 %v805
    %vm945 = vweird.f32 %v938
    %vm946 = vmor %vm944, %vm945
    %v947 = vsel %vm946, %v938, %v943
    %v948 = vrsqrt.pop %v806
    %v949 = vmul.f32 %v948, %v806
    %v950 = vmul.f32 %v949, %v948
    %v951 = vmul.f32 0.5, %v950
    %v952 = vsub.f32 1.5, %v951
    %v953 = vmul.f32 %v948, %v952
    %vm954 = vweird.f32 %v806
    %vm955 = vweird.f32 %v948
    %vm956 = vmor %vm954, %vm955
    %v957 = vsel %vm956, %v948, %v953
    %v958 = vrsqrt.pop %v807
    %v959 = vmul.f32 %v958, %v807
    %v960 = vmul.f32 %v959, %v958
    %v961 = vmul.f32 0.5, %v960
    %v962 = vsub.f32 1.5, %v961
    %v963 = vmul.f32 %v958, %v962
    %vm964 = vweird.f32 %v807
    %vm965 = vweird.f32 %v958
    %vm966 = vmor %vm964, %vm965
    %v967 = vsel %vm966, %v958, %v963
    %v968 = vmul.f32 %v728, %v817
    %v969 = vmul.f32 %v729, %v827
    %v970 = vmul.f32 %v730, %v837
    %v971 = vmul.f32 %v731, %v847
    %v972 = vmul.f32 %v732, %v857
    %v973 = vmul.f32 %v733, %v867
    %v974 = vmul.f32 %v734, %v877
    %v975 = vmul.f32 %v735, %v887
    %v976 = vmul.f32 %v736, %v897
    %v977 = vmul.f32 %v737, %v907
    %v978 = vmul.f32 %v738, %v917
    %v979 = vmul.f32 %v739, %v927
    %v980 = vmul.f32 %v740, %v937
    %v981 = vmul.f32 %v741, %v947
    %v982 = vmul.f32 %v742, %v957
    %v983 = vmul.f32 %v743, %v967
    %v984 = vlaneseq
    %v985 = vand.u32 %v984, 127
    %vm986 = vcmp.lt.s32.totalorder %v985, 7
    %v987 = vsel %vm986, %v968, -1e+30
    %v988 = vsel %vm986, %v969, -1e+30
    %v989 = vsel %vm986, %v970, -1e+30
    %v990 = vsel %vm986, %v971, -1e+30
    %v991 = vsel %vm986, %v972, -1e+30
    %v992 = vsel %vm986, %v973, -1e+30
    %v993 = vsel %vm986, %v974, -1e+30
    %v994 = vsel %vm986, %v975, -1e+30
    %v995 = vsel %vm986, %v976, -1e+30
    %v996 = vsel %vm986, %v977, -1e+30
    %v997 = vsel %vm986, %v978, -1e+30
    %v998 = vsel %vm986, %v979, -1e+30
    %v999 = vsel %vm986, %v980, -1e+30
    %v1000 = vsel %vm986, %v981, -1e+30
    %v1001 = vsel %vm986, %v982, -1e+30
    %v1002 = vsel %vm986, %v983, -1e+30
    %1003 = vmax.xlane.f32.xlu0 %v987
    %v1004 = vpop.xlane.xlu0 %1003
    %1005 = vmax.xlane.f32.xlu0 %v988
    %v1006 = vpop.xlane.xlu0 %1005
    %1007 = vmax.xlane.f32.xlu0 %v989
    %v1008 = vpop.xlane.xlu0 %1007
    %1009 = vmax.xlane.f32.xlu0 %v990
    %v1010 = vpop.xlane.xlu0 %1009
    %1011 = vmax.xlane.f32.xlu0 %v991
    %v1012 = vpop.xlane.xlu0 %1011
    %1013 = vmax.xlane.f32.xlu0 %v992
    %v1014 = vpop.xlane.xlu0 %1013
    %1015 = vmax.xlane.f32.xlu0 %v993
    %v1016 = vpop.xlane.xlu0 %1015
    %1017 = vmax.xlane.f32.xlu0 %v994
    %v1018 = vpop.xlane.xlu0 %1017
    %1019 = vmax.xlane.f32.xlu0 %v995
    %v1020 = vpop.xlane.xlu0 %1019
    %1021 = vmax.xlane.f32.xlu0 %v996
    %v1022 = vpop.xlane.xlu0 %1021
    %1023 = vmax.xlane.f32.xlu0 %v997
    %v1024 = vpop.xlane.xlu0 %1023
    %1025 = vmax.xlane.f32.xlu0 %v998
    %v1026 = vpop.xlane.xlu0 %1025
    %1027 = vmax.xlane.f32.xlu0 %v999
    %v1028 = vpop.xlane.xlu0 %1027
    %1029 = vmax.xlane.f32.xlu0 %v1000
    %v1030 = vpop.xlane.xlu0 %1029
    %1031 = vmax.xlane.f32.xlu0 %v1001
    %v1032 = vpop.xlane.xlu0 %1031
    %1033 = vmax.xlane.f32.xlu0 %v1002
    %v1034 = vpop.xlane.xlu0 %1033
    %v1035 = vsub.f32 %v987, %v1004
    %v1036 = vsub.f32 %v988, %v1006
    %v1037 = vsub.f32 %v989, %v1008
    %v1038 = vsub.f32 %v990, %v1010
    %v1039 = vsub.f32 %v991, %v1012
    %v1040 = vsub.f32 %v992, %v1014
    %v1041 = vsub.f32 %v993, %v1016
    %v1042 = vsub.f32 %v994, %v1018
    %v1043 = vsub.f32 %v995, %v1020
    %v1044 = vsub.f32 %v996, %v1022
    %v1045 = vsub.f32 %v997, %v1024
    %v1046 = vsub.f32 %v998, %v1026
    %v1047 = vsub.f32 %v999, %v1028
    %v1048 = vsub.f32 %v1000, %v1030
    %v1049 = vsub.f32 %v1001, %v1032
    %v1050 = vsub.f32 %v1002, %v1034
    %v1051 = vmul.f32 %v1035, 1.442695
    %v1052 = vpow.pop %v1051
    %v1053 = vmul.f32 %v1036, 1.442695
    %v1054 = vpow.pop %v1053
    %v1055 = vmul.f32 %v1037, 1.442695
    %v1056 = vpow.pop %v1055
    %v1057 = vmul.f32 %v1038, 1.442695
    %v1058 = vpow.pop %v1057
    %v1059 = vmul.f32 %v1039, 1.442695
    %v1060 = vpow.pop %v1059
    %v1061 = vmul.f32 %v1040, 1.442695
    %v1062 = vpow.pop %v1061
    %v1063 = vmul.f32 %v1041, 1.442695
    %v1064 = vpow.pop %v1063
    %v1065 = vmul.f32 %v1042, 1.442695
    %v1066 = vpow.pop %v1065
    %v1067 = vmul.f32 %v1043, 1.442695
    %v1068 = vpow.pop %v1067
    %v1069 = vmul.f32 %v1044, 1.442695
    %v1070 = vpow.pop %v1069
    %v1071 = vmul.f32 %v1045, 1.442695
    %v1072 = vpow.pop %v1071
    %v1073 = vmul.f32 %v1046, 1.442695
    %v1074 = vpow.pop %v1073
    %v1075 = vmul.f32 %v1047, 1.442695
    %v1076 = vpow.pop %v1075
    %v1077 = vmul.f32 %v1048, 1.442695
    %v1078 = vpow.pop %v1077
    %v1079 = vmul.f32 %v1049, 1.442695
    %v1080 = vpow.pop %v1079
    %v1081 = vmul.f32 %v1050, 1.442695
    %v1082 = vpow.pop %v1081
    %1083 = vadd.xlane.f32.xlu0 %v1052
    %v1084 = vpop.xlane.xlu0 %1083
    %1085 = vadd.xlane.f32.xlu0 %v1054
    %v1086 = vpop.xlane.xlu0 %1085
    %1087 = vadd.xlane.f32.xlu0 %v1056
    %v1088 = vpop.xlane.xlu0 %1087
    %1089 = vadd.xlane.f32.xlu0 %v1058
    %v1090 = vpop.xlane.xlu0 %1089
    %1091 = vadd.xlane.f32.xlu0 %v1060
    %v1092 = vpop.xlane.xlu0 %1091
    %1093 = vadd.xlane.f32.xlu0 %v1062
    %v1094 = vpop.xlane.xlu0 %1093
    %1095 = vadd.xlane.f32.xlu0 %v1064
    %v1096 = vpop.xlane.xlu0 %1095
    %1097 = vadd.xlane.f32.xlu0 %v1066
    %v1098 = vpop.xlane.xlu0 %1097
    %1099 = vadd.xlane.f32.xlu0 %v1068
    %v1100 = vpop.xlane.xlu0 %1099
    %1101 = vadd.xlane.f32.xlu0 %v1070
    %v1102 = vpop.xlane.xlu0 %1101
    %1103 = vadd.xlane.f32.xlu0 %v1072
    %v1104 = vpop.xlane.xlu0 %1103
    %1105 = vadd.xlane.f32.xlu0 %v1074
    %v1106 = vpop.xlane.xlu0 %1105
    %1107 = vadd.xlane.f32.xlu0 %v1076
    %v1108 = vpop.xlane.xlu0 %1107
    %1109 = vadd.xlane.f32.xlu0 %v1078
    %v1110 = vpop.xlane.xlu0 %1109
    %1111 = vadd.xlane.f32.xlu0 %v1080
    %v1112 = vpop.xlane.xlu0 %1111
    %1113 = vadd.xlane.f32.xlu0 %v1082
    %v1114 = vpop.xlane.xlu0 %1113
    %v1115 = vlog2.pop %v1084
    %v1116 = vmul.f32 %v1115, 0.6931472
    %v1117 = vlog2.pop %v1086
    %v1118 = vmul.f32 %v1117, 0.6931472
    %v1119 = vlog2.pop %v1088
    %v1120 = vmul.f32 %v1119, 0.6931472
    %v1121 = vlog2.pop %v1090
    %v1122 = vmul.f32 %v1121, 0.6931472
    %v1123 = vlog2.pop %v1092
    %v1124 = vmul.f32 %v1123, 0.6931472
    %v1125 = vlog2.pop %v1094
    %v1126 = vmul.f32 %v1125, 0.6931472
    %v1127 = vlog2.pop %v1096
    %v1128 = vmul.f32 %v1127, 0.6931472
    %v1129 = vlog2.pop %v1098
    %v1130 = vmul.f32 %v1129, 0.6931472
    %v1131 = vlog2.pop %v1100
    %v1132 = vmul.f32 %v1131, 0.6931472
    %v1133 = vlog2.pop %v1102
    %v1134 = vmul.f32 %v1133, 0.6931472
    %v1135 = vlog2.pop %v1104
    %v1136 = vmul.f32 %v1135, 0.6931472
    %v1137 = vlog2.pop %v1106
    %v1138 = vmul.f32 %v1137, 0.6931472
    %v1139 = vlog2.pop %v1108
    %v1140 = vmul.f32 %v1139, 0.6931472
    %v1141 = vlog2.pop %v1110
    %v1142 = vmul.f32 %v1141, 0.6931472
    %v1143 = vlog2.pop %v1112
    %v1144 = vmul.f32 %v1143, 0.6931472
    %v1145 = vlog2.pop %v1114
    %v1146 = vmul.f32 %v1145, 0.6931472
    %v1147 = vsub.f32 %v1035, %v1116
    %v1148 = vsub.f32 %v1036, %v1118
    %v1149 = vsub.f32 %v1037, %v1120
    %v1150 = vsub.f32 %v1038, %v1122
    %v1151 = vsub.f32 %v1039, %v1124
    %v1152 = vsub.f32 %v1040, %v1126
    %v1153 = vsub.f32 %v1041, %v1128
    %v1154 = vsub.f32 %v1042, %v1130
    %v1155 = vsub.f32 %v1043, %v1132
    %v1156 = vsub.f32 %v1044, %v1134
    %v1157 = vsub.f32 %v1045, %v1136
    %v1158 = vsub.f32 %v1046, %v1138
    %v1159 = vsub.f32 %v1047, %v1140
    %v1160 = vsub.f32 %v1048, %v1142
    %v1161 = vsub.f32 %v1049, %v1144
    %v1162 = vsub.f32 %v1050, %v1146
    %1163 = vst [vmem:[%s7] sm:$0xff] %v1147
    %1164 = vst [vmem:[%s7 + $0x8] sm:$0xff] %v1148
    %1165 = vst [vmem:[%s7 + $0x10] sm:$0xff] %v1149
    %1166 = vst [vmem:[%s7 + $0x18] sm:$0xff] %v1150
    %1167 = vst [vmem:[%s7 + $0x20] sm:$0xff] %v1151
    %1168 = vst [vmem:[%s7 + $0x28] sm:$0xff] %v1152
    %1169 = vst [vmem:[%s7 + $0x30] sm:$0xff] %v1153
    %1170 = vst [vmem:[%s7 + $0x38] sm:$0xff] %v1154
    %1171 = vst [vmem:[%s7 + $0x40] sm:$0xff] %v1155
    %1172 = vst [vmem:[%s7 + $0x48] sm:$0xff] %v1156
    %1173 = vst [vmem:[%s7 + $0x50] sm:$0xff] %v1157
    %1174 = vst [vmem:[%s7 + $0x58] sm:$0xff] %v1158
    %1175 = vst [vmem:[%s7 + $0x60] sm:$0xff] %v1159
    %1176 = vst [vmem:[%s7 + $0x68] sm:$0xff] %v1160
    %1177 = vst [vmem:[%s7 + $0x70] sm:$0xff] %v1161
    %1178 = vst [vmem:[%s7 + $0x78] sm:$0xff] %v1162
  $region37: #{graphsage_forward.3} parent=0 // pred_fallthru
    _
  // Predicated region
  $region38: #{graphsage_forward.3} parent=0 // pred_check
    _
  $region39: #{graphsage_forward.3} parent=0 // pred_check_branch
    %1180 = sbr.rel (0) target = $region41
  $region40: #{graphsage_forward.3} parent=0 // pred_region
    _
  $region41: #{graphsage_forward.3} parent=0 // pred_fallthru
    _
  // Predicated region
  $region42: #{graphsage_forward.3} parent=0 // pred_check
    _
  $region43: #{graphsage_forward.3} parent=0 // pred_check_branch
    %1182 = sbr.rel (0) target = $region45
  $region44: #{graphsage_forward.3} parent=0 // pred_region
    _
  $region45: #{graphsage_forward.3} parent=0 // pred_fallthru
    _

</llo_original>
